<compile_context>
chip_gen: v7x
topology: tpu7x:2x2x1
jax: 0.10.0
libtpu: 0.0.40
codegen_flags: <defaults>
</compile_context>

<pallas_src>
import functools

import jax
import jax.numpy as jnp
import numpy as np
from jax.experimental import pallas as pl
from jax.experimental.pallas import tpu as pltpu

MAX_TILE_H = 256          # output-height rows per grid step (multiple of 8)


def _round_up(v, m):
    return (v + m - 1) // m * m


def _interp_matrix(in_size, out_size):
    """1-D PyTorch F.interpolate(mode='bilinear', align_corners=False) weights."""
    scale = in_size / out_size
    o = np.arange(out_size, dtype=np.float64)
    src = np.maximum((o + 0.5) * scale - 0.5, 0.0)
    i0 = np.minimum(np.floor(src).astype(np.int64), in_size - 1)
    i1 = np.minimum(i0 + 1, in_size - 1)
    w1 = src - i0
    w0 = 1.0 - w1
    a = np.zeros((out_size, in_size), dtype=np.float64)
    a[np.arange(out_size), i0] += w0
    a[np.arange(out_size), i1] += w1
    return a


# ----------------------------- Pallas kernel --------------------------------

def _decoder_kernel(x_ref, wc_ref, b_ref, awt_ref, ah_ref, o_ref, z_ref, *,
                    feat_h, feat_w, ncls):
    # x_ref  : (1, Cin, h*w)           bf16  encoder features of one batch
    # wc_ref : (ncls, Cin)             bf16  1x1-conv weight
    # b_ref  : (ncls, 1)               f32   conv bias
    # awt_ref: (w, W_out)              f32   width-resize matrix, transposed
    # ah_ref : (tile_h, h)             f32   height-resize rows for this tile
    # o_ref  : (1, ncls, tile_h, W_out) f32  NCHW output tile
    # z_ref  : (h*ncls, W_out)         f32   per-batch scratch (row-major:
    #                                         row index = r*ncls + c)

    @pl.when(pl.program_id(1) == 0)
    def _():
        # 1x1 conv over channels, once per batch (hoisted out of the j loop):
        # (ncls, Cin) @ (Cin, h*w) -> (ncls, h*w), f32 accumulate, + bias.
        y = jnp.dot(wc_ref[...], x_ref[0],
                    preferred_element_type=jnp.float32) + b_ref[...]
        # Width-direction bilinear resize, one feature row at a time:
        #   z[r*ncls + c, :] = y[c, r*w:(r+1)*w] @ A_w^T
        for r in range(feat_h):
            z_ref[r * ncls:(r + 1) * ncls, :] = jnp.dot(
                y[:, r * feat_w:(r + 1) * feat_w], awt_ref[...],
                preferred_element_type=jnp.float32)

    # Height-direction bilinear resize for this tile of output rows; one class
    # slab at a time so results land directly in NCHW layout (W on lanes).
    a_h = ah_ref[...]
    for c in range(ncls):
        zc = z_ref[pl.ds(c, feat_h, stride=ncls), :]          # (h, W_out)
        o_ref[0, c] = jnp.dot(
            a_h, zc, preferred_element_type=jnp.float32).astype(o_ref.dtype)


@functools.partial(jax.jit, static_argnames=("out_hw",))
def plain_decoder_forward(x_nchw, conv_w, conv_b, out_hw):
    """PlainDecoder.forward: dropout(eval) -> 1x1 conv -> bilinear resize."""
    n, cin, h, w = x_nchw.shape
    ncls = conv_w.shape[0]
    H, W = out_hw
    hw_in = h * w

    # Output-height tiling (bounds VMEM for large images; 1 tile for small).
    tile_h = H if H <= MAX_TILE_H else MAX_TILE_H
    H_pad = _round_up(H, tile_h)
    n_h_tiles = H_pad // tile_h

    # NCHW -> (N, Cin, h*w): pure metadata reshape, channels on sublanes,
    # flattened pixels on lanes.  bf16 halves the dominant HBM read.
    x = x_nchw.reshape(n, cin, hw_in).astype(jnp.bfloat16)
    wc = conv_w[:, :, 0, 0].astype(jnp.bfloat16)              # (ncls, Cin)
    bias = conv_b.reshape(ncls, 1).astype(jnp.float32)

    # Separable resize matrices (tiny; built at trace time, kept in f32).
    ah_np = _interp_matrix(h, H).astype(np.float32)           # (H, h)
    if H_pad > H:
        ah_np = np.pad(ah_np, ((0, H_pad - H), (0, 0)))
    awt_np = _interp_matrix(w, W).T.astype(np.float32)        # (w, W)
    ah = jnp.asarray(ah_np)
    awt = jnp.asarray(awt_np)

    kernel = functools.partial(_decoder_kernel,
                               feat_h=h, feat_w=w, ncls=ncls)

    cost = pl.CostEstimate(
        flops=2 * n * (ncls * cin * hw_in          # 1x1 conv
                       + ncls * h * w * W          # width pass
                       + ncls * H_pad * h * W),    # height pass
        transcendentals=0,
        bytes_accessed=(x.size * 2 + wc.size * 2 + bias.size * 4
                        + awt.size * 4 + ah.size * 4
                        + n * ncls * H_pad * W * 4),
    )

    out = pl.pallas_call(
        kernel,
        out_shape=jax.ShapeDtypeStruct((n, ncls, H_pad, W), jnp.float32),
        grid=(n, n_h_tiles),
        in_specs=[
            pl.BlockSpec((1, cin, hw_in), lambda i, j: (i, 0, 0)),   # x
            pl.BlockSpec((ncls, cin), lambda i, j: (0, 0)),          # conv W
            pl.BlockSpec((ncls, 1), lambda i, j: (0, 0)),            # bias
            pl.BlockSpec((w, W), lambda i, j: (0, 0)),               # A_w^T
            pl.BlockSpec((tile_h, h), lambda i, j: (j, 0)),          # A_h tile
        ],
        out_specs=pl.BlockSpec((1, ncls, tile_h, W),
                               lambda i, j: (i, 0, j, 0)),
        scratch_shapes=[pltpu.VMEM((h * ncls, W), jnp.float32)],
        compiler_params=pltpu.CompilerParams(
            dimension_semantics=("parallel", "arbitrary"),
            vmem_limit_bytes=32 * 1024 * 1024),
        cost_estimate=cost,
    )(x, wc, bias, awt, ah)

    if H_pad > H:
        out = out[:, :, :H, :]
    return out                                    # already NCHW


# ----------------------------- reference & demo -----------------------------

def _reference(x_nchw, conv_w, conv_b, out_hw):
    """Pure-JAX f32 reference of the same forward."""
    n, cin, h, w = x_nchw.shape
    H, W = out_hw
    y = jnp.einsum('nchw,kc->nkhw', x_nchw, conv_w[:, :, 0, 0])
    y = y + conv_b[None, :, None, None]
    a_h = jnp.asarray(_interp_matrix(h, H).astype(np.float32))
    a_w = jnp.asarray(_interp_matrix(w, W).astype(np.float32))
    return jnp.einsum('Hh,nkhw,Ww->nkHW', a_h, y, a_w)


if __name__ == "__main__":
    key = jax.random.PRNGKey(0)
    k_x, k_w, k_b = jax.random.split(key, 3)

    num_classes = 5
    img_h, img_w = 64, 128                   # cfg.img_height / cfg.img_width
    n, cin, h, w = 2, 128, 8, 16             # encoder feature map (stride 8)

    x = jax.random.normal(k_x, (n, cin, h, w), jnp.float32)
    s = 1.0 / np.sqrt(cin)
    conv_w = s * jax.random.normal(k_w, (num_classes, cin, 1, 1), jnp.float32)
    conv_b = s * jax.random.normal(k_b, (num_classes,), jnp.float32)

    out = plain_decoder_forward(x, conv_w, conv_b, (img_h, img_w))
    out = jax.block_until_ready(out)

    assert out.shape == (n, num_classes, img_h, img_w), out.shape
    assert bool(jnp.all(jnp.isfinite(out)))
    ref = _reference(x, conv_w, conv_b, (img_h, img_w))
    err = float(jnp.max(jnp.abs(out - ref)))
    assert err < 5e-2, f"max abs err vs reference: {err}"
    print("KERNEL_OK")
</pallas_src>

<mosaic_0001>
module attributes {stable_mosaic.version = 11 : i64} {
  func.func @_decoder_kernel(%arg0: i32, %arg1: i32, %arg2: memref<1x128x128xbf16, #tpu.memory_space<vmem>>, %arg3: memref<5x128xbf16, #tpu.memory_space<vmem>>, %arg4: memref<5x1xf32, #tpu.memory_space<vmem>>, %arg5: memref<16x128xf32, #tpu.memory_space<vmem>>, %arg6: memref<64x8xf32, #tpu.memory_space<vmem>>, %arg7: memref<1x5x64x128xf32, #tpu.memory_space<vmem>>, %arg8: memref<40x128xf32, #tpu.memory_space<vmem>>) attributes {dimension_semantics = [#tpu.dimension_semantics<parallel>, #tpu.dimension_semantics<arbitrary>], iteration_bounds = array<i64: 2, 1>, scalar_prefetch = 0 : i64, scratch_operands = 1 : i64, tpu.core_type = #tpu.core_type<tc>, window_params = [{transform_indices = @transform_0, window_bounds = array<i64: 1, 128, 128>}, {pipeline_mode = #tpu.pipeline_mode<synchronous>, transform_indices = @transform_1, window_bounds = array<i64: 5, 128>}, {pipeline_mode = #tpu.pipeline_mode<synchronous>, transform_indices = @transform_2, window_bounds = array<i64: 5, 1>}, {pipeline_mode = #tpu.pipeline_mode<synchronous>, transform_indices = @transform_3, window_bounds = array<i64: 16, 128>}, {transform_indices = @transform_4, window_bounds = array<i64: 64, 8>}, {transform_indices = @transform_5, window_bounds = array<i64: 1, 5, 64, 128>}]} {
    %c0_i32 = arith.constant 0 : i32
    %0 = arith.cmpi eq, %arg1, %c0_i32 : i32
    %1 = arith.extui %0 : i1 to i32
    %c0_i32_0 = arith.constant 0 : i32
    %2 = arith.cmpi ne, %1, %c0_i32_0 : i32
    scf.if %2 {
      %c0_32 = arith.constant 0 : index
      %c0_33 = arith.constant 0 : index
      %29 = vector.load %arg3[%c0_32, %c0_33] : memref<5x128xbf16, #tpu.memory_space<vmem>>, vector<5x128xbf16>
      %c0_34 = arith.constant 0 : index
      %c0_35 = arith.constant 0 : index
      %c0_36 = arith.constant 0 : index
      %30 = vector.load %arg2[%c0_34, %c0_35, %c0_36] : memref<1x128x128xbf16, #tpu.memory_space<vmem>>, vector<1x128x128xbf16>
      %31 = vector.shape_cast %30 : vector<1x128x128xbf16> to vector<128x128xbf16>
      %cst_37 = arith.constant dense<0.000000e+00> : vector<5x128xf32>
      %32 = tpu.matmul %29, %31, %cst_37 {dimension_numbers = #tpu.dot_dimension_numbers<[1], [0], [0], [1], [0, 0, 1, 1], [], []>} : vector<5x128xbf16>, vector<128x128xbf16>, vector<5x128xf32> -> vector<5x128xf32>
      %c0_38 = arith.constant 0 : index
      %c0_39 = arith.constant 0 : index
      %33 = vector.load %arg4[%c0_38, %c0_39] : memref<5x1xf32, #tpu.memory_space<vmem>>, vector<5x1xf32>
      %34 = vector.broadcast %33 : vector<5x1xf32> to vector<5x128xf32>
      %35 = arith.addf %32, %34 : vector<5x128xf32>
      %36 = vector.extract_strided_slice %35 {offsets = [0, 0], sizes = [5, 16], strides = [1, 1]} : vector<5x128xf32> to vector<5x16xf32>
      %c0_40 = arith.constant 0 : index
      %c0_41 = arith.constant 0 : index
      %37 = vector.load %arg5[%c0_40, %c0_41] : memref<16x128xf32, #tpu.memory_space<vmem>>, vector<16x128xf32>
      %cst_42 = arith.constant dense<0.000000e+00> : vector<5x128xf32>
      %38 = tpu.matmul %36, %37, %cst_42 {dimension_numbers = #tpu.dot_dimension_numbers<[1], [0], [0], [1], [0, 0, 1, 1], [], []>} : vector<5x16xf32>, vector<16x128xf32>, vector<5x128xf32> -> vector<5x128xf32>
      %c0_43 = arith.constant 0 : index
      %c0_44 = arith.constant 0 : index
      %39 = vector.load %arg8[%c0_43, %c0_44] : memref<40x128xf32, #tpu.memory_space<vmem>>, vector<5x128xf32>
      tpu.vector_store %arg8[%c0_43, %c0_44], %38 {strides = array<i32>} : memref<40x128xf32, #tpu.memory_space<vmem>>, vector<5x128xf32>,
      %40 = vector.extract_strided_slice %35 {offsets = [0, 16], sizes = [5, 16], strides = [1, 1]} : vector<5x128xf32> to vector<5x16xf32>
      %c0_45 = arith.constant 0 : index
      %c0_46 = arith.constant 0 : index
      %41 = vector.load %arg5[%c0_45, %c0_46] : memref<16x128xf32, #tpu.memory_space<vmem>>, vector<16x128xf32>
      %cst_47 = arith.constant dense<0.000000e+00> : vector<5x128xf32>
      %42 = tpu.matmul %40, %41, %cst_47 {dimension_numbers = #tpu.dot_dimension_numbers<[1], [0], [0], [1], [0, 0, 1, 1], [], []>} : vector<5x16xf32>, vector<16x128xf32>, vector<5x128xf32> -> vector<5x128xf32>
      %c5 = arith.constant 5 : index
      %c0_48 = arith.constant 0 : index
      %43 = vector.load %arg8[%c5, %c0_48] : memref<40x128xf32, #tpu.memory_space<vmem>>, vector<5x128xf32>
      tpu.vector_store %arg8[%c5, %c0_48], %42 {strides = array<i32>} : memref<40x128xf32, #tpu.memory_space<vmem>>, vector<5x128xf32>,
      %44 = vector.extract_strided_slice %35 {offsets = [0, 32], sizes = [5, 16], strides = [1, 1]} : vector<5x128xf32> to vector<5x16xf32>
      %c0_49 = arith.constant 0 : index
      %c0_50 = arith.constant 0 : index
      %45 = vector.load %arg5[%c0_49, %c0_50] : memref<16x128xf32, #tpu.memory_space<vmem>>, vector<16x128xf32>
      %cst_51 = arith.constant dense<0.000000e+00> : vector<5x128xf32>
      %46 = tpu.matmul %44, %45, %cst_51 {dimension_numbers = #tpu.dot_dimension_numbers<[1], [0], [0], [1], [0, 0, 1, 1], [], []>} : vector<5x16xf32>, vector<16x128xf32>, vector<5x128xf32> -> vector<5x128xf32>
      %c10 = arith.constant 10 : index
      %c0_52 = arith.constant 0 : index
      %47 = vector.load %arg8[%c10, %c0_52] : memref<40x128xf32, #tpu.memory_space<vmem>>, vector<5x128xf32>
      tpu.vector_store %arg8[%c10, %c0_52], %46 {strides = array<i32>} : memref<40x128xf32, #tpu.memory_space<vmem>>, vector<5x128xf32>,
      %48 = vector.extract_strided_slice %35 {offsets = [0, 48], sizes = [5, 16], strides = [1, 1]} : vector<5x128xf32> to vector<5x16xf32>
      %c0_53 = arith.constant 0 : index
      %c0_54 = arith.constant 0 : index
      %49 = vector.load %arg5[%c0_53, %c0_54] : memref<16x128xf32, #tpu.memory_space<vmem>>, vector<16x128xf32>
      %cst_55 = arith.constant dense<0.000000e+00> : vector<5x128xf32>
      %50 = tpu.matmul %48, %49, %cst_55 {dimension_numbers = #tpu.dot_dimension_numbers<[1], [0], [0], [1], [0, 0, 1, 1], [], []>} : vector<5x16xf32>, vector<16x128xf32>, vector<5x128xf32> -> vector<5x128xf32>
      %c15 = arith.constant 15 : index
      %c0_56 = arith.constant 0 : index
      %51 = vector.load %arg8[%c15, %c0_56] : memref<40x128xf32, #tpu.memory_space<vmem>>, vector<5x128xf32>
      tpu.vector_store %arg8[%c15, %c0_56], %50 {strides = array<i32>} : memref<40x128xf32, #tpu.memory_space<vmem>>, vector<5x128xf32>,
      %52 = vector.extract_strided_slice %35 {offsets = [0, 64], sizes = [5, 16], strides = [1, 1]} : vector<5x128xf32> to vector<5x16xf32>
      %c0_57 = arith.constant 0 : index
      %c0_58 = arith.constant 0 : index
      %53 = vector.load %arg5[%c0_57, %c0_58] : memref<16x128xf32, #tpu.memory_space<vmem>>, vector<16x128xf32>
      %cst_59 = arith.constant dense<0.000000e+00> : vector<5x128xf32>
      %54 = tpu.matmul %52, %53, %cst_59 {dimension_numbers = #tpu.dot_dimension_numbers<[1], [0], [0], [1], [0, 0, 1, 1], [], []>} : vector<5x16xf32>, vector<16x128xf32>, vector<5x128xf32> -> vector<5x128xf32>
      %c20 = arith.constant 20 : index
      %c0_60 = arith.constant 0 : index
      %55 = vector.load %arg8[%c20, %c0_60] : memref<40x128xf32, #tpu.memory_space<vmem>>, vector<5x128xf32>
      tpu.vector_store %arg8[%c20, %c0_60], %54 {strides = array<i32>} : memref<40x128xf32, #tpu.memory_space<vmem>>, vector<5x128xf32>,
      %56 = vector.extract_strided_slice %35 {offsets = [0, 80], sizes = [5, 16], strides = [1, 1]} : vector<5x128xf32> to vector<5x16xf32>
      %c0_61 = arith.constant 0 : index
      %c0_62 = arith.constant 0 : index
      %57 = vector.load %arg5[%c0_61, %c0_62] : memref<16x128xf32, #tpu.memory_space<vmem>>, vector<16x128xf32>
      %cst_63 = arith.constant dense<0.000000e+00> : vector<5x128xf32>
      %58 = tpu.matmul %56, %57, %cst_63 {dimension_numbers = #tpu.dot_dimension_numbers<[1], [0], [0], [1], [0, 0, 1, 1], [], []>} : vector<5x16xf32>, vector<16x128xf32>, vector<5x128xf32> -> vector<5x128xf32>
      %c25 = arith.constant 25 : index
      %c0_64 = arith.constant 0 : index
      %59 = vector.load %arg8[%c25, %c0_64] : memref<40x128xf32, #tpu.memory_space<vmem>>, vector<5x128xf32>
      tpu.vector_store %arg8[%c25, %c0_64], %58 {strides = array<i32>} : memref<40x128xf32, #tpu.memory_space<vmem>>, vector<5x128xf32>,
      %60 = vector.extract_strided_slice %35 {offsets = [0, 96], sizes = [5, 16], strides = [1, 1]} : vector<5x128xf32> to vector<5x16xf32>
      %c0_65 = arith.constant 0 : index
      %c0_66 = arith.constant 0 : index
      %61 = vector.load %arg5[%c0_65, %c0_66] : memref<16x128xf32, #tpu.memory_space<vmem>>, vector<16x128xf32>
      %cst_67 = arith.constant dense<0.000000e+00> : vector<5x128xf32>
      %62 = tpu.matmul %60, %61, %cst_67 {dimension_numbers = #tpu.dot_dimension_numbers<[1], [0], [0], [1], [0, 0, 1, 1], [], []>} : vector<5x16xf32>, vector<16x128xf32>, vector<5x128xf32> -> vector<5x128xf32>
      %c30 = arith.constant 30 : index
      %c0_68 = arith.constant 0 : index
      %63 = vector.load %arg8[%c30, %c0_68] : memref<40x128xf32, #tpu.memory_space<vmem>>, vector<5x128xf32>
      tpu.vector_store %arg8[%c30, %c0_68], %62 {strides = array<i32>} : memref<40x128xf32, #tpu.memory_space<vmem>>, vector<5x128xf32>,
      %64 = vector.extract_strided_slice %35 {offsets = [0, 112], sizes = [5, 16], strides = [1, 1]} : vector<5x128xf32> to vector<5x16xf32>
      %c0_69 = arith.constant 0 : index
      %c0_70 = arith.constant 0 : index
      %65 = vector.load %arg5[%c0_69, %c0_70] : memref<16x128xf32, #tpu.memory_space<vmem>>, vector<16x128xf32>
      %cst_71 = arith.constant dense<0.000000e+00> : vector<5x128xf32>
      %66 = tpu.matmul %64, %65, %cst_71 {dimension_numbers = #tpu.dot_dimension_numbers<[1], [0], [0], [1], [0, 0, 1, 1], [], []>} : vector<5x16xf32>, vector<16x128xf32>, vector<5x128xf32> -> vector<5x128xf32>
      %c35 = arith.constant 35 : index
      %c0_72 = arith.constant 0 : index
      %67 = vector.load %arg8[%c35, %c0_72] : memref<40x128xf32, #tpu.memory_space<vmem>>, vector<5x128xf32>
      tpu.vector_store %arg8[%c35, %c0_72], %66 {strides = array<i32>} : memref<40x128xf32, #tpu.memory_space<vmem>>, vector<5x128xf32>,
    } else {
    }
    %c0 = arith.constant 0 : index
    %c0_1 = arith.constant 0 : index
    %3 = vector.load %arg6[%c0, %c0_1] : memref<64x8xf32, #tpu.memory_space<vmem>>, vector<64x8xf32>
    %c0_2 = arith.constant 0 : index
    %c0_3 = arith.constant 0 : index
    %4 = tpu.strided_load %arg8[%c0_2, %c0_3] {strides = array<i32: 5, 1>} : memref<40x128xf32, #tpu.memory_space<vmem>>, vector<8x128xf32>
    %cst = arith.constant dense<0.000000e+00> : vector<64x128xf32>
    %5 = tpu.matmul %3, %4, %cst {dimension_numbers = #tpu.dot_dimension_numbers<[1], [0], [0], [1], [0, 0, 1, 1], [], []>} : vector<64x8xf32>, vector<8x128xf32>, vector<64x128xf32> -> vector<64x128xf32>
    %c0_4 = arith.constant 0 : index
    %c0_5 = arith.constant 0 : index
    %c0_6 = arith.constant 0 : index
    %c0_7 = arith.constant 0 : index
    %6 = vector.load %arg7[%c0_4, %c0_5, %c0_6, %c0_7] : memref<1x5x64x128xf32, #tpu.memory_space<vmem>>, vector<1x1x64x128xf32>
    %7 = vector.shape_cast %6 : vector<1x1x64x128xf32> to vector<64x128xf32>
    %8 = vector.shape_cast %5 : vector<64x128xf32> to vector<1x1x64x128xf32>
    tpu.vector_store %arg7[%c0_4, %c0_5, %c0_6, %c0_7], %8 {strides = array<i32>} : memref<1x5x64x128xf32, #tpu.memory_space<vmem>>, vector<1x1x64x128xf32>,
    %c1 = arith.constant 1 : index
    %c0_8 = arith.constant 0 : index
    %9 = tpu.strided_load %arg8[%c1, %c0_8] {strides = array<i32: 5, 1>} : memref<40x128xf32, #tpu.memory_space<vmem>>, vector<8x128xf32>
    %cst_9 = arith.constant dense<0.000000e+00> : vector<64x128xf32>
    %10 = tpu.matmul %3, %9, %cst_9 {dimension_numbers = #tpu.dot_dimension_numbers<[1], [0], [0], [1], [0, 0, 1, 1], [], []>} : vector<64x8xf32>, vector<8x128xf32>, vector<64x128xf32> -> vector<64x128xf32>
    %c0_10 = arith.constant 0 : index
    %c1_11 = arith.constant 1 : index
    %c0_12 = arith.constant 0 : index
    %c0_13 = arith.constant 0 : index
    %11 = vector.load %arg7[%c0_10, %c1_11, %c0_12, %c0_13] : memref<1x5x64x128xf32, #tpu.memory_space<vmem>>, vector<1x1x64x128xf32>
    %12 = vector.shape_cast %11 : vector<1x1x64x128xf32> to vector<64x128xf32>
    %13 = vector.shape_cast %10 : vector<64x128xf32> to vector<1x1x64x128xf32>
    tpu.vector_store %arg7[%c0_10, %c1_11, %c0_12, %c0_13], %13 {strides = array<i32>} : memref<1x5x64x128xf32, #tpu.memory_space<vmem>>, vector<1x1x64x128xf32>,
    %c2 = arith.constant 2 : index
    %c0_14 = arith.constant 0 : index
    %14 = tpu.strided_load %arg8[%c2, %c0_14] {strides = array<i32: 5, 1>} : memref<40x128xf32, #tpu.memory_space<vmem>>, vector<8x128xf32>
    %cst_15 = arith.constant dense<0.000000e+00> : vector<64x128xf32>
    %15 = tpu.matmul %3, %14, %cst_15 {dimension_numbers = #tpu.dot_dimension_numbers<[1], [0], [0], [1], [0, 0, 1, 1], [], []>} : vector<64x8xf32>, vector<8x128xf32>, vector<64x128xf32> -> vector<64x128xf32>
    %c0_16 = arith.constant 0 : index
    %c2_17 = arith.constant 2 : index
    %c0_18 = arith.constant 0 : index
    %c0_19 = arith.constant 0 : index
    %16 = vector.load %arg7[%c0_16, %c2_17, %c0_18, %c0_19] : memref<1x5x64x128xf32, #tpu.memory_space<vmem>>, vector<1x1x64x128xf32>
    %17 = vector.shape_cast %16 : vector<1x1x64x128xf32> to vector<64x128xf32>
    %18 = vector.shape_cast %15 : vector<64x128xf32> to vector<1x1x64x128xf32>
    tpu.vector_store %arg7[%c0_16, %c2_17, %c0_18, %c0_19], %18 {strides = array<i32>} : memref<1x5x64x128xf32, #tpu.memory_space<vmem>>, vector<1x1x64x128xf32>,
    %c3 = arith.constant 3 : index
    %c0_20 = arith.constant 0 : index
    %19 = tpu.strided_load %arg8[%c3, %c0_20] {strides = array<i32: 5, 1>} : memref<40x128xf32, #tpu.memory_space<vmem>>, vector<8x128xf32>
    %cst_21 = arith.constant dense<0.000000e+00> : vector<64x128xf32>
    %20 = tpu.matmul %3, %19, %cst_21 {dimension_numbers = #tpu.dot_dimension_numbers<[1], [0], [0], [1], [0, 0, 1, 1], [], []>} : vector<64x8xf32>, vector<8x128xf32>, vector<64x128xf32> -> vector<64x128xf32>
    %c0_22 = arith.constant 0 : index
    %c3_23 = arith.constant 3 : index
    %c0_24 = arith.constant 0 : index
    %c0_25 = arith.constant 0 : index
    %21 = vector.load %arg7[%c0_22, %c3_23, %c0_24, %c0_25] : memref<1x5x64x128xf32, #tpu.memory_space<vmem>>, vector<1x1x64x128xf32>
    %22 = vector.shape_cast %21 : vector<1x1x64x128xf32> to vector<64x128xf32>
    %23 = vector.shape_cast %20 : vector<64x128xf32> to vector<1x1x64x128xf32>
    tpu.vector_store %arg7[%c0_22, %c3_23, %c0_24, %c0_25], %23 {strides = array<i32>} : memref<1x5x64x128xf32, #tpu.memory_space<vmem>>, vector<1x1x64x128xf32>,
    %c4 = arith.constant 4 : index
    %c0_26 = arith.constant 0 : index
    %24 = tpu.strided_load %arg8[%c4, %c0_26] {strides = array<i32: 5, 1>} : memref<40x128xf32, #tpu.memory_space<vmem>>, vector<8x128xf32>
    %cst_27 = arith.constant dense<0.000000e+00> : vector<64x128xf32>
    %25 = tpu.matmul %3, %24, %cst_27 {dimension_numbers = #tpu.dot_dimension_numbers<[1], [0], [0], [1], [0, 0, 1, 1], [], []>} : vector<64x8xf32>, vector<8x128xf32>, vector<64x128xf32> -> vector<64x128xf32>
    %c0_28 = arith.constant 0 : index
    %c4_29 = arith.constant 4 : index
    %c0_30 = arith.constant 0 : index
    %c0_31 = arith.constant 0 : index
    %26 = vector.load %arg7[%c0_28, %c4_29, %c0_30, %c0_31] : memref<1x5x64x128xf32, #tpu.memory_space<vmem>>, vector<1x1x64x128xf32>
    %27 = vector.shape_cast %26 : vector<1x1x64x128xf32> to vector<64x128xf32>
    %28 = vector.shape_cast %25 : vector<64x128xf32> to vector<1x1x64x128xf32>
    tpu.vector_store %arg7[%c0_28, %c4_29, %c0_30, %c0_31], %28 {strides = array<i32>} : memref<1x5x64x128xf32, #tpu.memory_space<vmem>>, vector<1x1x64x128xf32>,
    return
  }
  func.func @transform_0(%arg0: i32, %arg1: i32) -> (i32, i32, i32) {
    %c0_i32 = arith.constant 0 : i32
    %c0_i32_0 = arith.constant 0 : i32
    %c0_i32_1 = arith.constant 0 : i32
    return %arg0, %c0_i32, %c0_i32_0 : i32, i32, i32
  }
  func.func @transform_1(%arg0: i32, %arg1: i32) -> (i32, i32) {
    %c0_i32 = arith.constant 0 : i32
    %c0_i32_0 = arith.constant 0 : i32
    %c0_i32_1 = arith.constant 0 : i32
    return %c0_i32, %c0_i32_0 : i32, i32
  }
  func.func @transform_2(%arg0: i32, %arg1: i32) -> (i32, i32) {
    %c0_i32 = arith.constant 0 : i32
    %c0_i32_0 = arith.constant 0 : i32
    %c0_i32_1 = arith.constant 0 : i32
    return %c0_i32, %c0_i32_0 : i32, i32
  }
  func.func @transform_3(%arg0: i32, %arg1: i32) -> (i32, i32) {
    %c0_i32 = arith.constant 0 : i32
    %c0_i32_0 = arith.constant 0 : i32
    %c0_i32_1 = arith.constant 0 : i32
    return %c0_i32, %c0_i32_0 : i32, i32
  }
  func.func @transform_4(%arg0: i32, %arg1: i32) -> (i32, i32) {
    %c0_i32 = arith.constant 0 : i32
    %c0_i32_0 = arith.constant 0 : i32
    return %arg1, %c0_i32 : i32, i32
  }
  func.func @transform_5(%arg0: i32, %arg1: i32) -> (i32, i32, i32, i32) {
    %c0_i32 = arith.constant 0 : i32
    %c0_i32_0 = arith.constant 0 : i32
    %c0_i32_1 = arith.constant 0 : i32
    return %arg0, %c0_i32, %arg1, %c0_i32_0 : i32, i32, i32, i32
  }
}

</mosaic_0001>

<llo_original>
// kernel: plain_decoder_forward.1
$region0: #{plain_decoder_forward.1}
  #allocation0 [shape = 'u32[]', space=smem, size = 0x4, offset = 0x4, fixed_abs, tag = 'smem constant byte address 0x4 - core index']
  #allocation1 [shape = 'u32[144,128]{1,0:T(1,128)}', space=vmem, size = 0x12000, scoped, tag = 'internal scratch']
  #allocation2 [shape = 'f32[40,128]{1,0:T(8,128)}', space=vmem, size = 0x5000, scoped, tag = 'scratch operand']
  %s0 = inlined_call_operand.vmem [shape: bf16[2,128,128], index: 0, kind: input, shape index: {}]
  %s1 = inlined_call_operand.vmem [shape: bf16[5,128], index: 1, kind: input, shape index: {}]
  %s2 = inlined_call_operand.vmem [shape: f32[5,1], index: 2, kind: input, shape index: {}]
  %s3 = inlined_call_operand.vmem [shape: f32[16,128], index: 3, kind: input, shape index: {}]
  %s4 = inlined_call_operand.vmem [shape: f32[64,8], index: 4, kind: input, shape index: {}]
  %s5 = inlined_call_operand.hbm [shape: f32[2,5,64,128], index: 5, kind: output, shape index: {}]
  %s6 = sld [smem:[#allocation0]]
  $region57: #{plain_decoder_forward.1} parent=0
    _
  %s8 = ssub.s32 1, %s6
  %s9 = scalar_select 0, %s8, %s6
  $region1: #{plain_decoder_forward.1} parent=0
    #allocation3 [shape = 'u8[327680]{0}', space=vmem, size = 0x50000, scoped, tag = 'output window, operand 0']
    #allocation4 [shape = 's32[2]{0}', space=sflag, size = 0x8, scoped, tag = 'scoped memory for plain_decoder_forward.1']
    %10 = vsyncpa [#allocation4], 0
    %s11 = scalar_lea.sflag [#allocation4], 1
    %12 = vsyncpa %s11, 0
    loop: start=0, step=1, limit=4
    $region2: #{plain_decoder_forward.1} parent=1 // loop_pre_header
      _
    $region3: #{plain_decoder_forward.1} parent=1 // loop_header
      %s14 = sphi 0, %s18
      %p15 = scmp.ge.s32.totalorder %s14, 4
      %s21 = sphi 0, %s33
      %s22 = sphi 0, %s29
      %s23 = sphi 0, %s21
      %s24 = sphi 0, %s22
      %s25 = sphi 0, %s23
      %s26 = sphi 0, %s24
      %s36 = sphi 0, %s38
      %s39 = sphi 0, %s36
      %s40 = sphi 0, %s39
      %s56 = sphi 0, %s40
      %s60 = sphi 0, %s60
      %s62 = sphi 0, %s60
      %s63 = sphi 0, %s62
      %s77 = sphi 0, %s63
      %s81 = sphi 0, %s81
      %s83 = sphi 0, %s81
      %s84 = sphi 0, %s83
      %s98 = sphi 0, %s84
      %s102 = sphi 0, %s102
      %s104 = sphi 0, %s102
      %s105 = sphi 0, %s104
      %s119 = sphi 0, %s105
      %s125 = sphi 0, %s127
      %s128 = sphi 0, %s125
      %s129 = sphi 0, %s128
      %s145 = sphi 0, %s129
      %s153 = sphi 0, %s155
      %s156 = sphi 0, %s153
      %s157 = sphi 0, %s156
      %s173 = sphi 0, %s157
    $region4: #{plain_decoder_forward.1} parent=1 // loop_header_branch
      %17 = sbr.rel (%p15) target = $region8
    $region5: #{plain_decoder_forward.1} parent=1 // loop_body
      %s19 = ssub.s32 %s14, 1
      %s20 = ssub.s32 %s14, 2
      %s27 = sadd.s32 1, %s22
      %p28 = scmp.ge.s32.totalorder %s27, 1
      %s29 = scalar_select %p28, 0, %s27
      %s30 = sadd.s32 1, %s21
      %s31 = scalar_select %p28, %s30, %s21
      %p32 = scmp.ge.s32.totalorder %s31, 2
      %s33 = scalar_select %p32, 0, %s31
      %s34 = ssub.s32 %s21, %s33
      %p35 = scmp.eq.s32.totalorder %s34, 0
      %s37 = sadd.s32 %s36, 1
      %s38 = scalar_select %p35, %s36, %s37
      %p41 = pneg %p35
      %p42 = scmp.eq.s32.totalorder %s14, 1
      %p43 = por %p41, %p42
      %p44 = scmp.ne.s32.totalorder %s36, %s39
      %p45 = scmp.eq.s32.totalorder %s14, 0
      %p46 = por %p44, %p45
      %p47 = scmp.ne.s32.totalorder %s36, %s39
      %p48 = scmp.eq.s32.totalorder %s19, 1
      %p49 = por %p47, %p48
      %p50 = scmp.ne.s32.totalorder %s39, %s40
      %p51 = scmp.eq.s32.totalorder %s19, 0
      %p52 = por %p50, %p51
      %p53 = scmp.ne.s32.totalorder %s39, %s40
      %p54 = scmp.eq.s32.totalorder %s20, 1
      %p55 = por %p53, %p54
      %p57 = scmp.ne.s32.totalorder %s40, %s56
      %p58 = scmp.eq.s32.totalorder %s20, 0
      %p59 = por %p57, %p58
      %s61 = sadd.s32 %s60, 1
      %p64 = scmp.eq.s32.totalorder %s14, 1
      %p65 = scmp.ne.s32.totalorder %s60, %s62
      %p66 = scmp.eq.s32.totalorder %s14, 0
      %p67 = por %p65, %p66
      %p68 = scmp.ne.s32.totalorder %s60, %s62
      %p69 = scmp.eq.s32.totalorder %s19, 1
      %p70 = por %p68, %p69
      %p71 = scmp.ne.s32.totalorder %s62, %s63
      %p72 = scmp.eq.s32.totalorder %s19, 0
      %p73 = por %p71, %p72
      %p74 = scmp.ne.s32.totalorder %s62, %s63
      %p75 = scmp.eq.s32.totalorder %s20, 1
      %p76 = por %p74, %p75
      %p78 = scmp.ne.s32.totalorder %s63, %s77
      %p79 = scmp.eq.s32.totalorder %s20, 0
      %p80 = por %p78, %p79
      %s82 = sadd.s32 %s81, 1
      %p85 = scmp.eq.s32.totalorder %s14, 1
      %p86 = scmp.ne.s32.totalorder %s81, %s83
      %p87 = scmp.eq.s32.totalorder %s14, 0
      %p88 = por %p86, %p87
      %p89 = scmp.ne.s32.totalorder %s81, %s83
      %p90 = scmp.eq.s32.totalorder %s19, 1
      %p91 = por %p89, %p90
      %p92 = scmp.ne.s32.totalorder %s83, %s84
      %p93 = scmp.eq.s32.totalorder %s19, 0
      %p94 = por %p92, %p93
      %p95 = scmp.ne.s32.totalorder %s83, %s84
      %p96 = scmp.eq.s32.totalorder %s20, 1
      %p97 = por %p95, %p96
      %p99 = scmp.ne.s32.totalorder %s84, %s98
      %p100 = scmp.eq.s32.totalorder %s20, 0
      %p101 = por %p99, %p100
      %s103 = sadd.s32 %s102, 1
      %p106 = scmp.eq.s32.totalorder %s14, 1
      %p107 = scmp.ne.s32.totalorder %s102, %s104
      %p108 = scmp.eq.s32.totalorder %s14, 0
      %p109 = por %p107, %p108
      %p110 = scmp.ne.s32.totalorder %s102, %s104
      %p111 = scmp.eq.s32.totalorder %s19, 1
      %p112 = por %p110, %p111
      %p113 = scmp.ne.s32.totalorder %s104, %s105
      %p114 = scmp.eq.s32.totalorder %s19, 0
      %p115 = por %p113, %p114
      %p116 = scmp.ne.s32.totalorder %s104, %s105
      %p117 = scmp.eq.s32.totalorder %s20, 1
      %p118 = por %p116, %p117
      %p120 = scmp.ne.s32.totalorder %s105, %s119
      %p121 = scmp.eq.s32.totalorder %s20, 0
      %p122 = por %p120, %p121
      %s123 = ssub.s32 %s22, %s29
      %p124 = scmp.eq.s32.totalorder %s123, 0
      %s126 = sadd.s32 %s125, 1
      %s127 = scalar_select %p124, %s125, %s126
      %p130 = pneg %p124
      %p131 = scmp.eq.s32.totalorder %s14, 1
      %p132 = por %p130, %p131
      %p133 = scmp.ne.s32.totalorder %s125, %s128
      %p134 = scmp.eq.s32.totalorder %s14, 0
      %p135 = por %p133, %p134
      %p136 = scmp.ne.s32.totalorder %s125, %s128
      %p137 = scmp.eq.s32.totalorder %s19, 1
      %p138 = por %p136, %p137
      %p139 = scmp.ne.s32.totalorder %s128, %s129
      %p140 = scmp.eq.s32.totalorder %s19, 0
      %p141 = por %p139, %p140
      %p142 = scmp.ne.s32.totalorder %s128, %s129
      %p143 = scmp.eq.s32.totalorder %s20, 1
      %p144 = por %p142, %p143
      %p146 = scmp.ne.s32.totalorder %s129, %s145
      %p147 = scmp.eq.s32.totalorder %s20, 0
      %p148 = por %p146, %p147
      %s149 = ssub.s32 %s21, %s33
      %s150 = ssub.s32 %s22, %s29
      %s151 = sor.u32 %s149, %s150
      %p152 = scmp.eq.s32.totalorder %s151, 0
      %s154 = sadd.s32 %s153, 1
      %s155 = scalar_select %p152, %s153, %s154
      %p158 = pneg %p152
      %p159 = scmp.eq.s32.totalorder %s14, 1
      %p160 = por %p158, %p159
      %p161 = scmp.ne.s32.totalorder %s153, %s156
      %p162 = scmp.eq.s32.totalorder %s14, 0
      %p163 = por %p161, %p162
      %p164 = scmp.ne.s32.totalorder %s153, %s156
      %p165 = scmp.eq.s32.totalorder %s19, 1
      %p166 = por %p164, %p165
      %p167 = scmp.ne.s32.totalorder %s156, %s157
      %p168 = scmp.eq.s32.totalorder %s19, 0
      %p169 = por %p167, %p168
      %p170 = scmp.ne.s32.totalorder %s156, %s157
      %p171 = scmp.eq.s32.totalorder %s20, 1
      %p172 = por %p170, %p171
      %p174 = scmp.ne.s32.totalorder %s157, %s173
      %p175 = scmp.eq.s32.totalorder %s20, 0
      %p176 = por %p174, %p175
      %p177 = scmp.le.s32.totalorder 1, %s14
      %p178 = scmp.lt.s32.totalorder %s14, 3
      %p179 = pnand %p177, %p178
      %p180 = pneg %p179
      // Predicated region
      $region9: #{plain_decoder_forward.1} parent=5 // pred_check
        _
      $region10: #{plain_decoder_forward.1} parent=5 // pred_check_branch
        %182 = sbr.rel (%p179) target = $region12
      $region11: #{plain_decoder_forward.1} parent=5 // pred_region
        %s183 = ssub.s32 %s14, 1
        // Predicated region
        $region13: #{plain_decoder_forward.1} parent=11 // pred_check
          %p184 = pneg %p73
        $region14: #{plain_decoder_forward.1} parent=11 // pred_check_branch
          %186 = sbr.rel (%p184) target = $region16
        $region15: #{plain_decoder_forward.1} parent=11 // pred_region
          _
        $region16: #{plain_decoder_forward.1} parent=11 // pred_fallthru
          _
        // Predicated region
        $region17: #{plain_decoder_forward.1} parent=11 // pred_check
          %p187 = pneg %p94
        $region18: #{plain_decoder_forward.1} parent=11 // pred_check_branch
          %189 = sbr.rel (%p187) target = $region20
        $region19: #{plain_decoder_forward.1} parent=11 // pred_region
          _
        $region20: #{plain_decoder_forward.1} parent=11 // pred_fallthru
          _
        // Predicated region
        $region21: #{plain_decoder_forward.1} parent=11 // pred_check
          %p190 = pneg %p115
        $region22: #{plain_decoder_forward.1} parent=11 // pred_check_branch
          %192 = sbr.rel (%p190) target = $region24
        $region23: #{plain_decoder_forward.1} parent=11 // pred_region
          _
        $region24: #{plain_decoder_forward.1} parent=11 // pred_fallthru
          _
        // Predicated region
        $region25: #{plain_decoder_forward.1} parent=11 // pred_check
          %p193 = pneg %p141
        $region26: #{plain_decoder_forward.1} parent=11 // pred_check_branch
          %195 = sbr.rel (%p193) target = $region28
        $region27: #{plain_decoder_forward.1} parent=11 // pred_region
          %s196 = smul.u32 8, %s24
          %p197 = scmp.lt.s32.totalorder %s196, 7
          %s198 = scalar_select %p197, %s196, 7
          %s199 = smul.addr %s198, 8
          %s200 = scalar_lea.vmem %s4, %s199
          %s201 = smul.u32 8, %s24
        $region28: #{plain_decoder_forward.1} parent=11 // pred_fallthru
          _
      $region12: #{plain_decoder_forward.1} parent=5 // pred_fallthru
        _
      %p202 = scmp.lt.s32.totalorder %s14, 2
      // Predicated region
      $region29: #{plain_decoder_forward.1} parent=5 // pred_check
        %p203 = pneg %p202
      $region30: #{plain_decoder_forward.1} parent=5 // pred_check_branch
        %205 = sbr.rel (%p203) target = $region32
      $region31: #{plain_decoder_forward.1} parent=5 // pred_region
        // Predicated region
        $region33: #{plain_decoder_forward.1} parent=31 // pred_check
          %p206 = pneg %p46
        $region34: #{plain_decoder_forward.1} parent=31 // pred_check_branch
          %208 = sbr.rel (%p206) target = $region36
        $region35: #{plain_decoder_forward.1} parent=31 // pred_region
          %p209 = scmp.lt.s32.totalorder %s21, 1
          %s210 = scalar_select %p209, %s21, 1
          %s211 = smul.addr %s210, 16
          %s212 = smul.addr %s211, 4
          %s213 = scalar_lea.vmem %s0, %s212
        $region36: #{plain_decoder_forward.1} parent=31 // pred_fallthru
          _
      $region32: #{plain_decoder_forward.1} parent=5 // pred_fallthru
        _
      %p214 = scmp.le.s32.totalorder 1, %s14
      %p215 = scmp.lt.s32.totalorder %s14, 3
      %p216 = pnand %p214, %p215
      %p217 = pneg %p216
      // Predicated region
      $region37: #{plain_decoder_forward.1} parent=5 // pred_check
        _
      $region38: #{plain_decoder_forward.1} parent=5 // pred_check_branch
        %219 = sbr.rel (%p216) target = $region40
      $region39: #{plain_decoder_forward.1} parent=5 // pred_region
        %s220 = ssub.s32 %s14, 1
        %p221 = scmp.lt.s32.totalorder %s23, 1
        %s222 = scalar_select %p221, %s23, 1
        %s223 = smul.addr %s222, 16
        %s224 = smul.addr %s223, 4
        %s225 = scalar_lea.vmem %s0, %s224
        %p226 = pneg %p52
        %p227 = pneg %p49
        %p228 = pneg %p73
        %p229 = pneg %p70
        %p230 = pneg %p94
        %p231 = pneg %p91
        %p232 = pneg %p115
        %p233 = pneg %p112
        %s234 = smul.u32 8, %s24
        %p235 = scmp.lt.s32.totalorder %s234, 7
        %s236 = scalar_select %p235, %s234, 7
        %s237 = smul.addr %s236, 8
        %s238 = scalar_lea.vmem %s4, %s237
        %p239 = pneg %p141
        %p240 = pneg %p138
        %p241 = pneg %p169
        %p242 = pneg %p166
        %s243 = sand.u32 %s156, 1
        %s244 = scalar_lea.sflag [#allocation4], %s243
        %s245 = sand.u32 %s156, 1
        %s246 = smul.addr %s245, 320
        %s247 = scalar_lea.vmem [#allocation3], %s246
        %p248 = scmp.lt.s32.totalorder %s23, 1
        %s249 = scalar_select %p248, %s23, 1
        %s250 = smul.addr %s249, 16
        %s251 = smul.addr %s250, 4
        %s252 = scalar_lea.vmem %s0, %s251
        %s253 = smul.u32 8, %s24
        %p254 = scmp.lt.s32.totalorder %s253, 7
        %s255 = scalar_select %p254, %s253, 7
        %s256 = smul.addr %s255, 8
        %s257 = scalar_lea.vmem %s4, %s256
        %s258 = smul.u32 8, %s24
        %s259 = smul.u32 8, %s24
        %p261 = scmp.eq.s32.totalorder %s24, 0
        // Predicated region
        $region41: #{plain_decoder_forward.1} parent=39 // pred_check
          %p262 = pneg %p261
        $region42: #{plain_decoder_forward.1} parent=39 // pred_check_branch
          %264 = sbr.rel (%p262) target = $region44
        $region43: #{plain_decoder_forward.1} parent=39 // pred_region
          %v265 = vld [vmem:[%s1] sm:$0x7]
          %v266 = vld [vmem:[%s252] sm:$0xf]
          %v267 = vld [vmem:[%s252 + $0x4] sm:$0xf]
          %v268 = vld [vmem:[%s252 + $0x8] sm:$0xf]
          %v269 = vld [vmem:[%s252 + $0xc] sm:$0xf]
          %v270 = vld [vmem:[%s252 + $0x10] sm:$0xf]
          %v271 = vld [vmem:[%s252 + $0x14] sm:$0xf]
          %v272 = vld [vmem:[%s252 + $0x18] sm:$0xf]
          %v273 = vld [vmem:[%s252 + $0x1c] sm:$0xf]
          %v274 = vld [vmem:[%s252 + $0x20] sm:$0xf]
          %v275 = vld [vmem:[%s252 + $0x24] sm:$0xf]
          %v276 = vld [vmem:[%s252 + $0x28] sm:$0xf]
          %v277 = vld [vmem:[%s252 + $0x2c] sm:$0xf]
          %v278 = vld [vmem:[%s252 + $0x30] sm:$0xf]
          %v279 = vld [vmem:[%s252 + $0x34] sm:$0xf]
          %v280 = vld [vmem:[%s252 + $0x38] sm:$0xf]
          %v281 = vld [vmem:[%s252 + $0x3c] sm:$0xf]
          %v282 = vld [vmem:[%s2] sm:$0x1f]
          %284 = vset.pattern.permute.xlu0 0
          %285 = vperm.xlu0 %284, %v282
          %v286 = vpop.permute.xlu0 %285
          %v304 = vunpack.c.l.b16 %v266
          %v305 = vunpack.c.l.b16 %v267
          %v306 = vunpack.c.l.b16 %v268
          %v307 = vunpack.c.l.b16 %v269
          %v308 = vunpack.c.l.b16 %v270
          %v309 = vunpack.c.l.b16 %v271
          %v310 = vunpack.c.l.b16 %v272
          %v311 = vunpack.c.l.b16 %v273
          %v312 = vunpack.c.l.b16 %v274
          %v313 = vunpack.c.l.b16 %v275
          %v314 = vunpack.c.l.b16 %v276
          %v315 = vunpack.c.l.b16 %v277
          %v316 = vunpack.c.l.b16 %v278
          %v317 = vunpack.c.l.b16 %v279
          %v318 = vunpack.c.l.b16 %v280
          %v319 = vunpack.c.l.b16 %v281
          %v320 = vpack.c.b16 %v305, %v304
          %v321 = vpack.c.b16 %v307, %v306
          %v322 = vpack.c.b16 %v309, %v308
          %v323 = vpack.c.b16 %v311, %v310
          %v324 = vpack.c.b16 %v313, %v312
          %v325 = vpack.c.b16 %v315, %v314
          %v326 = vpack.c.b16 %v317, %v316
          %v327 = vpack.c.b16 %v319, %v318
          %336 = vmatprep.subr.bf16.mxu0 0
          %337 = vmatpush1.bf16.msra.mxu0 %v320
          %338 = vmatprep.subr.bf16.mxu0 0
          %339 = vmatpush1.bf16.msra.mxu0 %v321
          %340 = vmatprep.subr.bf16.mxu0 0
          %341 = vmatpush1.bf16.msra.mxu0 %v322
          %342 = vmatprep.subr.bf16.mxu0 0
          %343 = vmatpush1.bf16.msra.mxu0 %v323
          %344 = vmatprep.subr.bf16.mxu0 0
          %345 = vmatpush1.bf16.msra.mxu0 %v324
          %346 = vmatprep.subr.bf16.mxu0 0
          %347 = vmatpush1.bf16.msra.mxu0 %v325
          %348 = vmatprep.subr.bf16.mxu0 0
          %349 = vmatpush1.bf16.msra.mxu0 %v326
          %350 = vmatprep.subr.bf16.mxu0 0
          %351 = vmatpush1.bf16.msra.mxu0 %v327
          %352 = vmatprep.subr.bf16.mxu0 0
          %353 = vmatpush1.bf16.msra.mxu0 0
          %354 = vmatprep.subr.bf16.mxu0 0
          %355 = vmatpush1.bf16.msra.mxu0 0
          %356 = vmatprep.subr.bf16.mxu0 0
          %357 = vmatpush1.bf16.msra.mxu0 0
          %358 = vmatprep.subr.bf16.mxu0 0
          %359 = vmatpush1.bf16.msra.mxu0 0
          %360 = vmatprep.subr.bf16.mxu0 0
          %361 = vmatpush1.bf16.msra.mxu0 0
          %362 = vmatprep.subr.bf16.mxu0 0
          %363 = vmatpush1.bf16.msra.mxu0 0
          %364 = vmatprep.subr.bf16.mxu0 0
          %365 = vmatpush1.bf16.msra.mxu0 0
          %366 = vmatprep.subr.bf16.mxu0 0
          %367 = vmatpush1.bf16.msra.mxu0 0
          %368 = vmatprep.mubr.bf16.mxu0 0
          %369 = vmatmul.mubr.bf16.gmra.mrb[0].mxu0 %v265
          %v370 = vpop.f32.mrb[0].mxu0
          %v371 = vadd.f32 %v286, %v370
          %v372 = vpop.f32.mrb[0].mxu0
          %v373 = vpop.f32.mrb[0].mxu0
          %v374 = vpop.f32.mrb[0].mxu0
          %375 = vdwg.mxu0
          %v376 = vld [vmem:[%s3] sm:$0xff]
          %v377 = vld [vmem:[%s3 + $0x8] sm:$0xff]
          %vm378 = vcmask 130048
          %v380 = vsel %vm378, %v371, 0
          %382 = vmatprep.subr.mxu0 0.0
          %383 = vmatpush1.msra.mxu0 %v376
          %384 = vmatprep.subr.mxu0 0.0
          %385 = vmatpush1.msra.mxu0 %v377
          %386 = vmatprep.subr.mxu0 0.0
          %387 = vmatpush1.msra.mxu0 0.0
          %388 = vmatprep.subr.mxu0 0.0
          %389 = vmatpush1.msra.mxu0 0.0
          %390 = vmatprep.subr.mxu0 0.0
          %391 = vmatpush1.msra.mxu0 0.0
          %392 = vmatprep.subr.mxu0 0.0
          %393 = vmatpush1.msra.mxu0 0.0
          %394 = vmatprep.subr.mxu0 0.0
          %395 = vmatpush1.msra.mxu0 0.0
          %396 = vmatprep.subr.mxu0 0.0
          %397 = vmatpush1.msra.mxu0 0.0
          %398 = vmatprep.subr.mxu0 0.0
          %399 = vmatpush1.msra.mxu0 0.0
          %400 = vmatprep.subr.mxu0 0.0
          %401 = vmatpush1.msra.mxu0 0.0
          %402 = vmatprep.subr.mxu0 0.0
          %403 = vmatpush1.msra.mxu0 0.0
          %404 = vmatprep.subr.mxu0 0.0
          %405 = vmatpush1.msra.mxu0 0.0
          %406 = vmatprep.subr.mxu0 0.0
          %407 = vmatpush1.msra.mxu0 0.0
          %408 = vmatprep.subr.mxu0 0.0
          %409 = vmatpush1.msra.mxu0 0.0
          %410 = vmatprep.subr.mxu0 0.0
          %411 = vmatpush1.msra.mxu0 0.0
          %412 = vmatprep.subr.mxu0 0.0
          %413 = vmatpush1.msra.mxu0 0.0
          %414 = vmatprep.subr.mxu0 0.0
          %415 = vmatpush1.msra.mxu0 0.0
          %416 = vmatprep.subr.mxu0 0.0
          %417 = vmatpush1.msra.mxu0 0.0
          %418 = vmatprep.subr.mxu0 0.0
          %419 = vmatpush1.msra.mxu0 0.0
          %420 = vmatprep.subr.mxu0 0.0
          %421 = vmatpush1.msra.mxu0 0.0
          %422 = vmatprep.subr.mxu0 0.0
          %423 = vmatpush1.msra.mxu0 0.0
          %424 = vmatprep.subr.mxu0 0.0
          %425 = vmatpush1.msra.mxu0 0.0
          %426 = vmatprep.subr.mxu0 0.0
          %427 = vmatpush1.msra.mxu0 0.0
          %428 = vmatprep.subr.mxu0 0.0
          %429 = vmatpush1.msra.mxu0 0.0
          %430 = vmatprep.subr.mxu0 0.0
          %431 = vmatpush1.msra.mxu0 0.0
          %432 = vmatprep.subr.mxu0 0.0
          %433 = vmatpush1.msra.mxu0 0.0
          %434 = vmatprep.subr.mxu0 0.0
          %435 = vmatpush1.msra.mxu0 0.0
          %436 = vmatprep.subr.mxu0 0.0
          %437 = vmatpush1.msra.mxu0 0.0
          %438 = vmatprep.subr.mxu0 0.0
          %439 = vmatpush1.msra.mxu0 0.0
          %440 = vmatprep.subr.mxu0 0.0
          %441 = vmatpush1.msra.mxu0 0.0
          %442 = vmatprep.subr.mxu0 0.0
          %443 = vmatpush1.msra.mxu0 0.0
          %444 = vmatprep.subr.mxu0 0.0
          %445 = vmatpush1.msra.mxu0 0.0
          %446 = vmatprep.mubr.f32.mxu0 0.0
          %447 = vmatmul.mubr.f32.gmra.mrb[0].mxu0 %v380
          %v448 = vpop.f32.mrb[0].mxu0
          %v449 = vadd.f32 0.0, %v448
          %v450 = vpop.f32.mrb[0].mxu0
          %451 = vdwg.mxu0
          %452 = vst [vmem:[#allocation2] sm:$0x1f] %v449
          %v453 = vld [vmem:[%s3] sm:$0xff]
          %v454 = vld [vmem:[%s3 + $0x8] sm:$0xff]
          %455 = vrot.lane.b32.xlu0 %v371, 112
          %v456 = vpop.permute.xlu0 %455
          %v457 = vsel %vm378, %v456, 0
          %459 = vmatprep.subr.mxu0 0.0
          %460 = vmatpush1.msra.mxu0 %v453
          %461 = vmatprep.subr.mxu0 0.0
          %462 = vmatpush1.msra.mxu0 %v454
          %463 = vmatprep.subr.mxu0 0.0
          %464 = vmatpush1.msra.mxu0 0.0
          %465 = vmatprep.subr.mxu0 0.0
          %466 = vmatpush1.msra.mxu0 0.0
          %467 = vmatprep.subr.mxu0 0.0
          %468 = vmatpush1.msra.mxu0 0.0
          %469 = vmatprep.subr.mxu0 0.0
          %470 = vmatpush1.msra.mxu0 0.0
          %471 = vmatprep.subr.mxu0 0.0
          %472 = vmatpush1.msra.mxu0 0.0
          %473 = vmatprep.subr.mxu0 0.0
          %474 = vmatpush1.msra.mxu0 0.0
          %475 = vmatprep.subr.mxu0 0.0
          %476 = vmatpush1.msra.mxu0 0.0
          %477 = vmatprep.subr.mxu0 0.0
          %478 = vmatpush1.msra.mxu0 0.0
          %479 = vmatprep.subr.mxu0 0.0
          %480 = vmatpush1.msra.mxu0 0.0
          %481 = vmatprep.subr.mxu0 0.0
          %482 = vmatpush1.msra.mxu0 0.0
          %483 = vmatprep.subr.mxu0 0.0
          %484 = vmatpush1.msra.mxu0 0.0
          %485 = vmatprep.subr.mxu0 0.0
          %486 = vmatpush1.msra.mxu0 0.0
          %487 = vmatprep.subr.mxu0 0.0
          %488 = vmatpush1.msra.mxu0 0.0
          %489 = vmatprep.subr.mxu0 0.0
          %490 = vmatpush1.msra.mxu0 0.0
          %491 = vmatprep.subr.mxu0 0.0
          %492 = vmatpush1.msra.mxu0 0.0
          %493 = vmatprep.subr.mxu0 0.0
          %494 = vmatpush1.msra.mxu0 0.0
          %495 = vmatprep.subr.mxu0 0.0
          %496 = vmatpush1.msra.mxu0 0.0
          %497 = vmatprep.subr.mxu0 0.0
          %498 = vmatpush1.msra.mxu0 0.0
          %499 = vmatprep.subr.mxu0 0.0
          %500 = vmatpush1.msra.mxu0 0.0
          %501 = vmatprep.subr.mxu0 0.0
          %502 = vmatpush1.msra.mxu0 0.0
          %503 = vmatprep.subr.mxu0 0.0
          %504 = vmatpush1.msra.mxu0 0.0
          %505 = vmatprep.subr.mxu0 0.0
          %506 = vmatpush1.msra.mxu0 0.0
          %507 = vmatprep.subr.mxu0 0.0
          %508 = vmatpush1.msra.mxu0 0.0
          %509 = vmatprep.subr.mxu0 0.0
          %510 = vmatpush1.msra.mxu0 0.0
          %511 = vmatprep.subr.mxu0 0.0
          %512 = vmatpush1.msra.mxu0 0.0
          %513 = vmatprep.subr.mxu0 0.0
          %514 = vmatpush1.msra.mxu0 0.0
          %515 = vmatprep.subr.mxu0 0.0
          %516 = vmatpush1.msra.mxu0 0.0
          %517 = vmatprep.subr.mxu0 0.0
          %518 = vmatpush1.msra.mxu0 0.0
          %519 = vmatprep.subr.mxu0 0.0
          %520 = vmatpush1.msra.mxu0 0.0
          %521 = vmatprep.subr.mxu0 0.0
          %522 = vmatpush1.msra.mxu0 0.0
          %523 = vmatprep.mubr.f32.mxu0 0.0
          %524 = vmatmul.mubr.f32.gmra.mrb[0].mxu0 %v457
          %v525 = vpop.f32.mrb[0].mxu0
          %v526 = vadd.f32 0.0, %v525
          %v527 = vpop.f32.mrb[0].mxu0
          %528 = vdwg.mxu0
          %529 = vst [vmem:[#allocation2 + $0x5] sm:$0x1f] %v526
          %v530 = vld [vmem:[%s3] sm:$0xff]
          %v531 = vld [vmem:[%s3 + $0x8] sm:$0xff]
          %532 = vrot.lane.b32.xlu0 %v371, 96
          %v533 = vpop.permute.xlu0 %532
          %v534 = vsel %vm378, %v533, 0
          %536 = vmatprep.subr.mxu0 0.0
          %537 = vmatpush1.msra.mxu0 %v530
          %538 = vmatprep.subr.mxu0 0.0
          %539 = vmatpush1.msra.mxu0 %v531
          %540 = vmatprep.subr.mxu0 0.0
          %541 = vmatpush1.msra.mxu0 0.0
          %542 = vmatprep.subr.mxu0 0.0
          %543 = vmatpush1.msra.mxu0 0.0
          %544 = vmatprep.subr.mxu0 0.0
          %545 = vmatpush1.msra.mxu0 0.0
          %546 = vmatprep.subr.mxu0 0.0
          %547 = vmatpush1.msra.mxu0 0.0
          %548 = vmatprep.subr.mxu0 0.0
          %549 = vmatpush1.msra.mxu0 0.0
          %550 = vmatprep.subr.mxu0 0.0
          %551 = vmatpush1.msra.mxu0 0.0
          %552 = vmatprep.subr.mxu0 0.0
          %553 = vmatpush1.msra.mxu0 0.0
          %554 = vmatprep.subr.mxu0 0.0
          %555 = vmatpush1.msra.mxu0 0.0
          %556 = vmatprep.subr.mxu0 0.0
          %557 = vmatpush1.msra.mxu0 0.0
          %558 = vmatprep.subr.mxu0 0.0
          %559 = vmatpush1.msra.mxu0 0.0
          %560 = vmatprep.subr.mxu0 0.0
          %561 = vmatpush1.msra.mxu0 0.0
          %562 = vmatprep.subr.mxu0 0.0
          %563 = vmatpush1.msra.mxu0 0.0
          %564 = vmatprep.subr.mxu0 0.0
          %565 = vmatpush1.msra.mxu0 0.0
          %566 = vmatprep.subr.mxu0 0.0
          %567 = vmatpush1.msra.mxu0 0.0
          %568 = vmatprep.subr.mxu0 0.0
          %569 = vmatpush1.msra.mxu0 0.0
          %570 = vmatprep.subr.mxu0 0.0
          %571 = vmatpush1.msra.mxu0 0.0
          %572 = vmatprep.subr.mxu0 0.0
          %573 = vmatpush1.msra.mxu0 0.0
          %574 = vmatprep.subr.mxu0 0.0
          %575 = vmatpush1.msra.mxu0 0.0
          %576 = vmatprep.subr.mxu0 0.0
          %577 = vmatpush1.msra.mxu0 0.0
          %578 = vmatprep.subr.mxu0 0.0
          %579 = vmatpush1.msra.mxu0 0.0
          %580 = vmatprep.subr.mxu0 0.0
          %581 = vmatpush1.msra.mxu0 0.0
          %582 = vmatprep.subr.mxu0 0.0
          %583 = vmatpush1.msra.mxu0 0.0
          %584 = vmatprep.subr.mxu0 0.0
          %585 = vmatpush1.msra.mxu0 0.0
          %586 = vmatprep.subr.mxu0 0.0
          %587 = vmatpush1.msra.mxu0 0.0
          %588 = vmatprep.subr.mxu0 0.0
          %589 = vmatpush1.msra.mxu0 0.0
          %590 = vmatprep.subr.mxu0 0.0
          %591 = vmatpush1.msra.mxu0 0.0
          %592 = vmatprep.subr.mxu0 0.0
          %593 = vmatpush1.msra.mxu0 0.0
          %594 = vmatprep.subr.mxu0 0.0
          %595 = vmatpush1.msra.mxu0 0.0
          %596 = vmatprep.subr.mxu0 0.0
          %597 = vmatpush1.msra.mxu0 0.0
          %598 = vmatprep.subr.mxu0 0.0
          %599 = vmatpush1.msra.mxu0 0.0
          %600 = vmatprep.mubr.f32.mxu0 0.0
          %601 = vmatmul.mubr.f32.gmra.mrb[0].mxu0 %v534
          %v602 = vpop.f32.mrb[0].mxu0
          %v603 = vadd.f32 0.0, %v602
          %v604 = vpop.f32.mrb[0].mxu0
          %605 = vdwg.mxu0
          %606 = vst [vmem:[#allocation2 + $0xa] sm:$0x1f] %v603
          %v607 = vld [vmem:[%s3] sm:$0xff]
          %v608 = vld [vmem:[%s3 + $0x8] sm:$0xff]
          %609 = vrot.lane.b32.xlu0 %v371, 80
          %v610 = vpop.permute.xlu0 %609
          %v611 = vsel %vm378, %v610, 0
          %613 = vmatprep.subr.mxu0 0.0
          %614 = vmatpush1.msra.mxu0 %v607
          %615 = vmatprep.subr.mxu0 0.0
          %616 = vmatpush1.msra.mxu0 %v608
          %617 = vmatprep.subr.mxu0 0.0
          %618 = vmatpush1.msra.mxu0 0.0
          %619 = vmatprep.subr.mxu0 0.0
          %620 = vmatpush1.msra.mxu0 0.0
          %621 = vmatprep.subr.mxu0 0.0
          %622 = vmatpush1.msra.mxu0 0.0
          %623 = vmatprep.subr.mxu0 0.0
          %624 = vmatpush1.msra.mxu0 0.0
          %625 = vmatprep.subr.mxu0 0.0
          %626 = vmatpush1.msra.mxu0 0.0
          %627 = vmatprep.subr.mxu0 0.0
          %628 = vmatpush1.msra.mxu0 0.0
          %629 = vmatprep.subr.mxu0 0.0
          %630 = vmatpush1.msra.mxu0 0.0
          %631 = vmatprep.subr.mxu0 0.0
          %632 = vmatpush1.msra.mxu0 0.0
          %633 = vmatprep.subr.mxu0 0.0
          %634 = vmatpush1.msra.mxu0 0.0
          %635 = vmatprep.subr.mxu0 0.0
          %636 = vmatpush1.msra.mxu0 0.0
          %637 = vmatprep.subr.mxu0 0.0
          %638 = vmatpush1.msra.mxu0 0.0
          %639 = vmatprep.subr.mxu0 0.0
          %640 = vmatpush1.msra.mxu0 0.0
          %641 = vmatprep.subr.mxu0 0.0
          %642 = vmatpush1.msra.mxu0 0.0
          %643 = vmatprep.subr.mxu0 0.0
          %644 = vmatpush1.msra.mxu0 0.0
          %645 = vmatprep.subr.mxu0 0.0
          %646 = vmatpush1.msra.mxu0 0.0
          %647 = vmatprep.subr.mxu0 0.0
          %648 = vmatpush1.msra.mxu0 0.0
          %649 = vmatprep.subr.mxu0 0.0
          %650 = vmatpush1.msra.mxu0 0.0
          %651 = vmatprep.subr.mxu0 0.0
          %652 = vmatpush1.msra.mxu0 0.0
          %653 = vmatprep.subr.mxu0 0.0
          %654 = vmatpush1.msra.mxu0 0.0
          %655 = vmatprep.subr.mxu0 0.0
          %656 = vmatpush1.msra.mxu0 0.0
          %657 = vmatprep.subr.mxu0 0.0
          %658 = vmatpush1.msra.mxu0 0.0
          %659 = vmatprep.subr.mxu0 0.0
          %660 = vmatpush1.msra.mxu0 0.0
          %661 = vmatprep.subr.mxu0 0.0
          %662 = vmatpush1.msra.mxu0 0.0
          %663 = vmatprep.subr.mxu0 0.0
          %664 = vmatpush1.msra.mxu0 0.0
          %665 = vmatprep.subr.mxu0 0.0
          %666 = vmatpush1.msra.mxu0 0.0
          %667 = vmatprep.subr.mxu0 0.0
          %668 = vmatpush1.msra.mxu0 0.0
          %669 = vmatprep.subr.mxu0 0.0
          %670 = vmatpush1.msra.mxu0 0.0
          %671 = vmatprep.subr.mxu0 0.0
          %672 = vmatpush1.msra.mxu0 0.0
          %673 = vmatprep.subr.mxu0 0.0
          %674 = vmatpush1.msra.mxu0 0.0
          %675 = vmatprep.subr.mxu0 0.0
          %676 = vmatpush1.msra.mxu0 0.0
          %677 = vmatprep.mubr.f32.mxu0 0.0
          %678 = vmatmul.mubr.f32.gmra.mrb[0].mxu0 %v611
          %v679 = vpop.f32.mrb[0].mxu0
          %v680 = vadd.f32 0.0, %v679
          %v681 = vpop.f32.mrb[0].mxu0
          %682 = vdwg.mxu0
          %683 = vst [vmem:[#allocation2 + $0xf] sm:$0x1f] %v680
          %v684 = vld [vmem:[%s3] sm:$0xff]
          %v685 = vld [vmem:[%s3 + $0x8] sm:$0xff]
          %686 = vrot.lane.b32.xlu0 %v371, 64
          %v687 = vpop.permute.xlu0 %686
          %v688 = vsel %vm378, %v687, 0
          %690 = vmatprep.subr.mxu0 0.0
          %691 = vmatpush1.msra.mxu0 %v684
          %692 = vmatprep.subr.mxu0 0.0
          %693 = vmatpush1.msra.mxu0 %v685
          %694 = vmatprep.subr.mxu0 0.0
          %695 = vmatpush1.msra.mxu0 0.0
          %696 = vmatprep.subr.mxu0 0.0
          %697 = vmatpush1.msra.mxu0 0.0
          %698 = vmatprep.subr.mxu0 0.0
          %699 = vmatpush1.msra.mxu0 0.0
          %700 = vmatprep.subr.mxu0 0.0
          %701 = vmatpush1.msra.mxu0 0.0
          %702 = vmatprep.subr.mxu0 0.0
          %703 = vmatpush1.msra.mxu0 0.0
          %704 = vmatprep.subr.mxu0 0.0
          %705 = vmatpush1.msra.mxu0 0.0
          %706 = vmatprep.subr.mxu0 0.0
          %707 = vmatpush1.msra.mxu0 0.0
          %708 = vmatprep.subr.mxu0 0.0
          %709 = vmatpush1.msra.mxu0 0.0
          %710 = vmatprep.subr.mxu0 0.0
          %711 = vmatpush1.msra.mxu0 0.0
          %712 = vmatprep.subr.mxu0 0.0
          %713 = vmatpush1.msra.mxu0 0.0
          %714 = vmatprep.subr.mxu0 0.0
          %715 = vmatpush1.msra.mxu0 0.0
          %716 = vmatprep.subr.mxu0 0.0
          %717 = vmatpush1.msra.mxu0 0.0
          %718 = vmatprep.subr.mxu0 0.0
          %719 = vmatpush1.msra.mxu0 0.0
          %720 = vmatprep.subr.mxu0 0.0
          %721 = vmatpush1.msra.mxu0 0.0
          %722 = vmatprep.subr.mxu0 0.0
          %723 = vmatpush1.msra.mxu0 0.0
          %724 = vmatprep.subr.mxu0 0.0
          %725 = vmatpush1.msra.mxu0 0.0
          %726 = vmatprep.subr.mxu0 0.0
          %727 = vmatpush1.msra.mxu0 0.0
          %728 = vmatprep.subr.mxu0 0.0
          %729 = vmatpush1.msra.mxu0 0.0
          %730 = vmatprep.subr.mxu0 0.0
          %731 = vmatpush1.msra.mxu0 0.0
          %732 = vmatprep.subr.mxu0 0.0
          %733 = vmatpush1.msra.mxu0 0.0
          %734 = vmatprep.subr.mxu0 0.0
          %735 = vmatpush1.msra.mxu0 0.0
          %736 = vmatprep.subr.mxu0 0.0
          %737 = vmatpush1.msra.mxu0 0.0
          %738 = vmatprep.subr.mxu0 0.0
          %739 = vmatpush1.msra.mxu0 0.0
          %740 = vmatprep.subr.mxu0 0.0
          %741 = vmatpush1.msra.mxu0 0.0
          %742 = vmatprep.subr.mxu0 0.0
          %743 = vmatpush1.msra.mxu0 0.0
          %744 = vmatprep.subr.mxu0 0.0
          %745 = vmatpush1.msra.mxu0 0.0
          %746 = vmatprep.subr.mxu0 0.0
          %747 = vmatpush1.msra.mxu0 0.0
          %748 = vmatprep.subr.mxu0 0.0
          %749 = vmatpush1.msra.mxu0 0.0
          %750 = vmatprep.subr.mxu0 0.0
          %751 = vmatpush1.msra.mxu0 0.0
          %752 = vmatprep.subr.mxu0 0.0
          %753 = vmatpush1.msra.mxu0 0.0
          %754 = vmatprep.mubr.f32.mxu0 0.0
          %755 = vmatmul.mubr.f32.gmra.mrb[0].mxu0 %v688
          %v756 = vpop.f32.mrb[0].mxu0
          %v757 = vadd.f32 0.0, %v756
          %v758 = vpop.f32.mrb[0].mxu0
          %759 = vdwg.mxu0
          %760 = vst [vmem:[#allocation2 + $0x14] sm:$0x1f] %v757
          %v761 = vld [vmem:[%s3] sm:$0xff]
          %v762 = vld [vmem:[%s3 + $0x8] sm:$0xff]
          %763 = vrot.lane.b32.xlu0 %v371, 48
          %v764 = vpop.permute.xlu0 %763
          %v765 = vsel %vm378, %v764, 0
          %767 = vmatprep.subr.mxu0 0.0
          %768 = vmatpush1.msra.mxu0 %v761
          %769 = vmatprep.subr.mxu0 0.0
          %770 = vmatpush1.msra.mxu0 %v762
          %771 = vmatprep.subr.mxu0 0.0
          %772 = vmatpush1.msra.mxu0 0.0
          %773 = vmatprep.subr.mxu0 0.0
          %774 = vmatpush1.msra.mxu0 0.0
          %775 = vmatprep.subr.mxu0 0.0
          %776 = vmatpush1.msra.mxu0 0.0
          %777 = vmatprep.subr.mxu0 0.0
          %778 = vmatpush1.msra.mxu0 0.0
          %779 = vmatprep.subr.mxu0 0.0
          %780 = vmatpush1.msra.mxu0 0.0
          %781 = vmatprep.subr.mxu0 0.0
          %782 = vmatpush1.msra.mxu0 0.0
          %783 = vmatprep.subr.mxu0 0.0
          %784 = vmatpush1.msra.mxu0 0.0
          %785 = vmatprep.subr.mxu0 0.0
          %786 = vmatpush1.msra.mxu0 0.0
          %787 = vmatprep.subr.mxu0 0.0
          %788 = vmatpush1.msra.mxu0 0.0
          %789 = vmatprep.subr.mxu0 0.0
          %790 = vmatpush1.msra.mxu0 0.0
          %791 = vmatprep.subr.mxu0 0.0
          %792 = vmatpush1.msra.mxu0 0.0
          %793 = vmatprep.subr.mxu0 0.0
          %794 = vmatpush1.msra.mxu0 0.0
          %795 = vmatprep.subr.mxu0 0.0
          %796 = vmatpush1.msra.mxu0 0.0
          %797 = vmatprep.subr.mxu0 0.0
          %798 = vmatpush1.msra.mxu0 0.0
          %799 = vmatprep.subr.mxu0 0.0
          %800 = vmatpush1.msra.mxu0 0.0
          %801 = vmatprep.subr.mxu0 0.0
          %802 = vmatpush1.msra.mxu0 0.0
          %803 = vmatprep.subr.mxu0 0.0
          %804 = vmatpush1.msra.mxu0 0.0
          %805 = vmatprep.subr.mxu0 0.0
          %806 = vmatpush1.msra.mxu0 0.0
          %807 = vmatprep.subr.mxu0 0.0
          %808 = vmatpush1.msra.mxu0 0.0
          %809 = vmatprep.subr.mxu0 0.0
          %810 = vmatpush1.msra.mxu0 0.0
          %811 = vmatprep.subr.mxu0 0.0
          %812 = vmatpush1.msra.mxu0 0.0
          %813 = vmatprep.subr.mxu0 0.0
          %814 = vmatpush1.msra.mxu0 0.0
          %815 = vmatprep.subr.mxu0 0.0
          %816 = vmatpush1.msra.mxu0 0.0
          %817 = vmatprep.subr.mxu0 0.0
          %818 = vmatpush1.msra.mxu0 0.0
          %819 = vmatprep.subr.mxu0 0.0
          %820 = vmatpush1.msra.mxu0 0.0
          %821 = vmatprep.subr.mxu0 0.0
          %822 = vmatpush1.msra.mxu0 0.0
          %823 = vmatprep.subr.mxu0 0.0
          %824 = vmatpush1.msra.mxu0 0.0
          %825 = vmatprep.subr.mxu0 0.0
          %826 = vmatpush1.msra.mxu0 0.0
          %827 = vmatprep.subr.mxu0 0.0
          %828 = vmatpush1.msra.mxu0 0.0
          %829 = vmatprep.subr.mxu0 0.0
          %830 = vmatpush1.msra.mxu0 0.0
          %831 = vmatprep.mubr.f32.mxu0 0.0
          %832 = vmatmul.mubr.f32.gmra.mrb[0].mxu0 %v765
          %v833 = vpop.f32.mrb[0].mxu0
          %v834 = vadd.f32 0.0, %v833
          %v835 = vpop.f32.mrb[0].mxu0
          %836 = vdwg.mxu0
          %837 = vst [vmem:[#allocation2 + $0x19] sm:$0x1f] %v834
          %v838 = vld [vmem:[%s3] sm:$0xff]
          %v839 = vld [vmem:[%s3 + $0x8] sm:$0xff]
          %840 = vrot.lane.b32.xlu0 %v371, 32
          %v841 = vpop.permute.xlu0 %840
          %v842 = vsel %vm378, %v841, 0
          %844 = vmatprep.subr.mxu0 0.0
          %845 = vmatpush1.msra.mxu0 %v838
          %846 = vmatprep.subr.mxu0 0.0
          %847 = vmatpush1.msra.mxu0 %v839
          %848 = vmatprep.subr.mxu0 0.0
          %849 = vmatpush1.msra.mxu0 0.0
          %850 = vmatprep.subr.mxu0 0.0
          %851 = vmatpush1.msra.mxu0 0.0
          %852 = vmatprep.subr.mxu0 0.0
          %853 = vmatpush1.msra.mxu0 0.0
          %854 = vmatprep.subr.mxu0 0.0
          %855 = vmatpush1.msra.mxu0 0.0
          %856 = vmatprep.subr.mxu0 0.0
          %857 = vmatpush1.msra.mxu0 0.0
          %858 = vmatprep.subr.mxu0 0.0
          %859 = vmatpush1.msra.mxu0 0.0
          %860 = vmatprep.subr.mxu0 0.0
          %861 = vmatpush1.msra.mxu0 0.0
          %862 = vmatprep.subr.mxu0 0.0
          %863 = vmatpush1.msra.mxu0 0.0
          %864 = vmatprep.subr.mxu0 0.0
          %865 = vmatpush1.msra.mxu0 0.0
          %866 = vmatprep.subr.mxu0 0.0
          %867 = vmatpush1.msra.mxu0 0.0
          %868 = vmatprep.subr.mxu0 0.0
          %869 = vmatpush1.msra.mxu0 0.0
          %870 = vmatprep.subr.mxu0 0.0
          %871 = vmatpush1.msra.mxu0 0.0
          %872 = vmatprep.subr.mxu0 0.0
          %873 = vmatpush1.msra.mxu0 0.0
          %874 = vmatprep.subr.mxu0 0.0
          %875 = vmatpush1.msra.mxu0 0.0
          %876 = vmatprep.subr.mxu0 0.0
          %877 = vmatpush1.msra.mxu0 0.0
          %878 = vmatprep.subr.mxu0 0.0
          %879 = vmatpush1.msra.mxu0 0.0
          %880 = vmatprep.subr.mxu0 0.0
          %881 = vmatpush1.msra.mxu0 0.0
          %882 = vmatprep.subr.mxu0 0.0
          %883 = vmatpush1.msra.mxu0 0.0
          %884 = vmatprep.subr.mxu0 0.0
          %885 = vmatpush1.msra.mxu0 0.0
          %886 = vmatprep.subr.mxu0 0.0
          %887 = vmatpush1.msra.mxu0 0.0
          %888 = vmatprep.subr.mxu0 0.0
          %889 = vmatpush1.msra.mxu0 0.0
          %890 = vmatprep.subr.mxu0 0.0
          %891 = vmatpush1.msra.mxu0 0.0
          %892 = vmatprep.subr.mxu0 0.0
          %893 = vmatpush1.msra.mxu0 0.0
          %894 = vmatprep.subr.mxu0 0.0
          %895 = vmatpush1.msra.mxu0 0.0
          %896 = vmatprep.subr.mxu0 0.0
          %897 = vmatpush1.msra.mxu0 0.0
          %898 = vmatprep.subr.mxu0 0.0
          %899 = vmatpush1.msra.mxu0 0.0
          %900 = vmatprep.subr.mxu0 0.0
          %901 = vmatpush1.msra.mxu0 0.0
          %902 = vmatprep.subr.mxu0 0.0
          %903 = vmatpush1.msra.mxu0 0.0
          %904 = vmatprep.subr.mxu0 0.0
          %905 = vmatpush1.msra.mxu0 0.0
          %906 = vmatprep.subr.mxu0 0.0
          %907 = vmatpush1.msra.mxu0 0.0
          %908 = vmatprep.mubr.f32.mxu0 0.0
          %909 = vmatmul.mubr.f32.gmra.mrb[0].mxu0 %v842
          %v910 = vpop.f32.mrb[0].mxu0
          %v911 = vadd.f32 0.0, %v910
          %v912 = vpop.f32.mrb[0].mxu0
          %913 = vdwg.mxu0
          %914 = vst [vmem:[#allocation2 + $0x1e] sm:$0x1f] %v911
          %v915 = vld [vmem:[%s3] sm:$0xff]
          %v916 = vld [vmem:[%s3 + $0x8] sm:$0xff]
          %917 = vrot.lane.b32.xlu0 %v371, 16
          %v918 = vpop.permute.xlu0 %917
          %v919 = vsel %vm378, %v918, 0
          %921 = vmatprep.subr.mxu0 0.0
          %922 = vmatpush1.msra.mxu0 %v915
          %923 = vmatprep.subr.mxu0 0.0
          %924 = vmatpush1.msra.mxu0 %v916
          %925 = vmatprep.subr.mxu0 0.0
          %926 = vmatpush1.msra.mxu0 0.0
          %927 = vmatprep.subr.mxu0 0.0
          %928 = vmatpush1.msra.mxu0 0.0
          %929 = vmatprep.subr.mxu0 0.0
          %930 = vmatpush1.msra.mxu0 0.0
          %931 = vmatprep.subr.mxu0 0.0
          %932 = vmatpush1.msra.mxu0 0.0
          %933 = vmatprep.subr.mxu0 0.0
          %934 = vmatpush1.msra.mxu0 0.0
          %935 = vmatprep.subr.mxu0 0.0
          %936 = vmatpush1.msra.mxu0 0.0
          %937 = vmatprep.subr.mxu0 0.0
          %938 = vmatpush1.msra.mxu0 0.0
          %939 = vmatprep.subr.mxu0 0.0
          %940 = vmatpush1.msra.mxu0 0.0
          %941 = vmatprep.subr.mxu0 0.0
          %942 = vmatpush1.msra.mxu0 0.0
          %943 = vmatprep.subr.mxu0 0.0
          %944 = vmatpush1.msra.mxu0 0.0
          %945 = vmatprep.subr.mxu0 0.0
          %946 = vmatpush1.msra.mxu0 0.0
          %947 = vmatprep.subr.mxu0 0.0
          %948 = vmatpush1.msra.mxu0 0.0
          %949 = vmatprep.subr.mxu0 0.0
          %950 = vmatpush1.msra.mxu0 0.0
          %951 = vmatprep.subr.mxu0 0.0
          %952 = vmatpush1.msra.mxu0 0.0
          %953 = vmatprep.subr.mxu0 0.0
          %954 = vmatpush1.msra.mxu0 0.0
          %955 = vmatprep.subr.mxu0 0.0
          %956 = vmatpush1.msra.mxu0 0.0
          %957 = vmatprep.subr.mxu0 0.0
          %958 = vmatpush1.msra.mxu0 0.0
          %959 = vmatprep.subr.mxu0 0.0
          %960 = vmatpush1.msra.mxu0 0.0
          %961 = vmatprep.subr.mxu0 0.0
          %962 = vmatpush1.msra.mxu0 0.0
          %963 = vmatprep.subr.mxu0 0.0
          %964 = vmatpush1.msra.mxu0 0.0
          %965 = vmatprep.subr.mxu0 0.0
          %966 = vmatpush1.msra.mxu0 0.0
          %967 = vmatprep.subr.mxu0 0.0
          %968 = vmatpush1.msra.mxu0 0.0
          %969 = vmatprep.subr.mxu0 0.0
          %970 = vmatpush1.msra.mxu0 0.0
          %971 = vmatprep.subr.mxu0 0.0
          %972 = vmatpush1.msra.mxu0 0.0
          %973 = vmatprep.subr.mxu0 0.0
          %974 = vmatpush1.msra.mxu0 0.0
          %975 = vmatprep.subr.mxu0 0.0
          %976 = vmatpush1.msra.mxu0 0.0
          %977 = vmatprep.subr.mxu0 0.0
          %978 = vmatpush1.msra.mxu0 0.0
          %979 = vmatprep.subr.mxu0 0.0
          %980 = vmatpush1.msra.mxu0 0.0
          %981 = vmatprep.subr.mxu0 0.0
          %982 = vmatpush1.msra.mxu0 0.0
          %983 = vmatprep.subr.mxu0 0.0
          %984 = vmatpush1.msra.mxu0 0.0
          %985 = vmatprep.mubr.f32.mxu0 0.0
          %986 = vmatmul.mubr.f32.gmra.mrb[0].mxu0 %v919
          %v987 = vpop.f32.mrb[0].mxu0
          %v988 = vadd.f32 0.0, %v987
          %v989 = vpop.f32.mrb[0].mxu0
          %990 = vdwg.mxu0
          %991 = vst [vmem:[#allocation2 + $0x23] sm:$0x1f] %v988
        $region44: #{plain_decoder_forward.1} parent=39 // pred_fallthru
          _
        %v992 = vld [vmem:[%s257] sm:$0xff]
        %v993 = vld [vmem:[%s257 + $0x8] sm:$0xff]
        %v994 = vld [vmem:[%s257 + $0x10] sm:$0xff]
        %v995 = vld [vmem:[%s257 + $0x18] sm:$0xff]
        %v996 = vld [vmem:[%s257 + $0x20] sm:$0xff]
        %v997 = vld [vmem:[%s257 + $0x28] sm:$0xff]
        %v998 = vld [vmem:[%s257 + $0x30] sm:$0xff]
        %v999 = vld [vmem:[%s257 + $0x38] sm:$0xff]
        %v1000 = vld [vmem:[#allocation2] ss:$5 sm:$0xff]
        %vm1001 = vcmask 64512
        %v1003 = vsel %vm1001, %v992, 0
        %v1006 = vsel %vm1001, %v993, 0
        %v1009 = vsel %vm1001, %v994, 0
        %v1012 = vsel %vm1001, %v995, 0
        %v1015 = vsel %vm1001, %v996, 0
        %v1018 = vsel %vm1001, %v997, 0
        %v1021 = vsel %vm1001, %v998, 0
        %v1024 = vsel %vm1001, %v999, 0
        %1026 = vmatprep.subr.mxu0 0.0
        %1027 = vmatpush1.msra.mxu0 %v1000
        %1028 = vmatprep.subr.mxu0 0.0
        %1029 = vmatpush1.msra.mxu0 0.0
        %1030 = vmatprep.subr.mxu0 0.0
        %1031 = vmatpush1.msra.mxu0 0.0
        %1032 = vmatprep.subr.mxu0 0.0
        %1033 = vmatpush1.msra.mxu0 0.0
        %1034 = vmatprep.subr.mxu0 0.0
        %1035 = vmatpush1.msra.mxu0 0.0
        %1036 = vmatprep.subr.mxu0 0.0
        %1037 = vmatpush1.msra.mxu0 0.0
        %1038 = vmatprep.subr.mxu0 0.0
        %1039 = vmatpush1.msra.mxu0 0.0
        %1040 = vmatprep.subr.mxu0 0.0
        %1041 = vmatpush1.msra.mxu0 0.0
        %1042 = vmatprep.subr.mxu0 0.0
        %1043 = vmatpush1.msra.mxu0 0.0
        %1044 = vmatprep.subr.mxu0 0.0
        %1045 = vmatpush1.msra.mxu0 0.0
        %1046 = vmatprep.subr.mxu0 0.0
        %1047 = vmatpush1.msra.mxu0 0.0
        %1048 = vmatprep.subr.mxu0 0.0
        %1049 = vmatpush1.msra.mxu0 0.0
        %1050 = vmatprep.subr.mxu0 0.0
        %1051 = vmatpush1.msra.mxu0 0.0
        %1052 = vmatprep.subr.mxu0 0.0
        %1053 = vmatpush1.msra.mxu0 0.0
        %1054 = vmatprep.subr.mxu0 0.0
        %1055 = vmatpush1.msra.mxu0 0.0
        %1056 = vmatprep.subr.mxu0 0.0
        %1057 = vmatpush1.msra.mxu0 0.0
        %1058 = vmatprep.subr.mxu0 0.0
        %1059 = vmatpush1.msra.mxu0 0.0
        %1060 = vmatprep.subr.mxu0 0.0
        %1061 = vmatpush1.msra.mxu0 0.0
        %1062 = vmatprep.subr.mxu0 0.0
        %1063 = vmatpush1.msra.mxu0 0.0
        %1064 = vmatprep.subr.mxu0 0.0
        %1065 = vmatpush1.msra.mxu0 0.0
        %1066 = vmatprep.subr.mxu0 0.0
        %1067 = vmatpush1.msra.mxu0 0.0
        %1068 = vmatprep.subr.mxu0 0.0
        %1069 = vmatpush1.msra.mxu0 0.0
        %1070 = vmatprep.subr.mxu0 0.0
        %1071 = vmatpush1.msra.mxu0 0.0
        %1072 = vmatprep.subr.mxu0 0.0
        %1073 = vmatpush1.msra.mxu0 0.0
        %1074 = vmatprep.subr.mxu0 0.0
        %1075 = vmatpush1.msra.mxu0 0.0
        %1076 = vmatprep.subr.mxu0 0.0
        %1077 = vmatpush1.msra.mxu0 0.0
        %1078 = vmatprep.subr.mxu0 0.0
        %1079 = vmatpush1.msra.mxu0 0.0
        %1080 = vmatprep.subr.mxu0 0.0
        %1081 = vmatpush1.msra.mxu0 0.0
        %1082 = vmatprep.subr.mxu0 0.0
        %1083 = vmatpush1.msra.mxu0 0.0
        %1084 = vmatprep.subr.mxu0 0.0
        %1085 = vmatpush1.msra.mxu0 0.0
        %1086 = vmatprep.subr.mxu0 0.0
        %1087 = vmatpush1.msra.mxu0 0.0
        %1088 = vmatprep.subr.mxu0 0.0
        %1089 = vmatpush1.msra.mxu0 0.0
        %1090 = vmatprep.mubr.f32.mxu0 0.0
        %1091 = vmatmul.mubr.f32.gmra.mrb[0].mxu0 %v1003
        %v1092 = vpop.f32.mrb[0].mxu0
        %v1093 = vadd.f32 0.0, %v1092
        %v1094 = vpop.f32.mrb[0].mxu0
        %1095 = vmatprep.mubr.f32.mxu0 0.0
        %1096 = vmatmul.mubr.f32.gmra.mrb[0].mxu0 %v1006
        %v1097 = vpop.f32.mrb[0].mxu0
        %v1098 = vadd.f32 0.0, %v1097
        %v1099 = vpop.f32.mrb[0].mxu0
        %1100 = vmatprep.mubr.f32.mxu0 0.0
        %1101 = vmatmul.mubr.f32.gmra.mrb[0].mxu0 %v1009
        %v1102 = vpop.f32.mrb[0].mxu0
        %v1103 = vadd.f32 0.0, %v1102
        %v1104 = vpop.f32.mrb[0].mxu0
        %1105 = vmatprep.mubr.f32.mxu0 0.0
        %1106 = vmatmul.mubr.f32.gmra.mrb[0].mxu0 %v1012
        %v1107 = vpop.f32.mrb[0].mxu0
        %v1108 = vadd.f32 0.0, %v1107
        %v1109 = vpop.f32.mrb[0].mxu0
        %1110 = vmatprep.mubr.f32.mxu0 0.0
        %1111 = vmatmul.mubr.f32.gmra.mrb[0].mxu0 %v1015
        %v1112 = vpop.f32.mrb[0].mxu0
        %v1113 = vadd.f32 0.0, %v1112
        %v1114 = vpop.f32.mrb[0].mxu0
        %1115 = vmatprep.mubr.f32.mxu0 0.0
        %1116 = vmatmul.mubr.f32.gmra.mrb[0].mxu0 %v1018
        %v1117 = vpop.f32.mrb[0].mxu0
        %v1118 = vadd.f32 0.0, %v1117
        %v1119 = vpop.f32.mrb[0].mxu0
        %1120 = vmatprep.mubr.f32.mxu0 0.0
        %1121 = vmatmul.mubr.f32.gmra.mrb[0].mxu0 %v1021
        %v1122 = vpop.f32.mrb[0].mxu0
        %v1123 = vadd.f32 0.0, %v1122
        %v1124 = vpop.f32.mrb[0].mxu0
        %1125 = vmatprep.mubr.f32.mxu0 0.0
        %1126 = vmatmul.mubr.f32.gmra.mrb[0].mxu0 %v1024
        %v1127 = vpop.f32.mrb[0].mxu0
        %v1128 = vadd.f32 0.0, %v1127
        %v1129 = vpop.f32.mrb[0].mxu0
        %1130 = vdwg.mxu0
        %1131 = vst [vmem:[%s247] sm:$0xff] %v1093
        %1132 = vst [vmem:[%s247 + $0x8] sm:$0xff] %v1098
        %1133 = vst [vmem:[%s247 + $0x10] sm:$0xff] %v1103
        %1134 = vst [vmem:[%s247 + $0x18] sm:$0xff] %v1108
        %1135 = vst [vmem:[%s247 + $0x20] sm:$0xff] %v1113
        %1136 = vst [vmem:[%s247 + $0x28] sm:$0xff] %v1118
        %1137 = vst [vmem:[%s247 + $0x30] sm:$0xff] %v1123
        %1138 = vst [vmem:[%s247 + $0x38] sm:$0xff] %v1128
        %s1139 = scalar_lea.vmem [#allocation2], 1
        %v1140 = vld [vmem:[%s1139] ss:$5 sm:$0xff]
        %1141 = vmatprep.subr.mxu0 0.0
        %1142 = vmatpush1.msra.mxu0 %v1140
        %1143 = vmatprep.subr.mxu0 0.0
        %1144 = vmatpush1.msra.mxu0 0.0
        %1145 = vmatprep.subr.mxu0 0.0
        %1146 = vmatpush1.msra.mxu0 0.0
        %1147 = vmatprep.subr.mxu0 0.0
        %1148 = vmatpush1.msra.mxu0 0.0
        %1149 = vmatprep.subr.mxu0 0.0
        %1150 = vmatpush1.msra.mxu0 0.0
        %1151 = vmatprep.subr.mxu0 0.0
        %1152 = vmatpush1.msra.mxu0 0.0
        %1153 = vmatprep.subr.mxu0 0.0
        %1154 = vmatpush1.msra.mxu0 0.0
        %1155 = vmatprep.subr.mxu0 0.0
        %1156 = vmatpush1.msra.mxu0 0.0
        %1157 = vmatprep.subr.mxu0 0.0
        %1158 = vmatpush1.msra.mxu0 0.0
        %1159 = vmatprep.subr.mxu0 0.0
        %1160 = vmatpush1.msra.mxu0 0.0
        %1161 = vmatprep.subr.mxu0 0.0
        %1162 = vmatpush1.msra.mxu0 0.0
        %1163 = vmatprep.subr.mxu0 0.0
        %1164 = vmatpush1.msra.mxu0 0.0
        %1165 = vmatprep.subr.mxu0 0.0
        %1166 = vmatpush1.msra.mxu0 0.0
        %1167 = vmatprep.subr.mxu0 0.0
        %1168 = vmatpush1.msra.mxu0 0.0
        %1169 = vmatprep.subr.mxu0 0.0
        %1170 = vmatpush1.msra.mxu0 0.0
        %1171 = vmatprep.subr.mxu0 0.0
        %1172 = vmatpush1.msra.mxu0 0.0
        %1173 = vmatprep.subr.mxu0 0.0
        %1174 = vmatpush1.msra.mxu0 0.0
        %1175 = vmatprep.subr.mxu0 0.0
        %1176 = vmatpush1.msra.mxu0 0.0
        %1177 = vmatprep.subr.mxu0 0.0
        %1178 = vmatpush1.msra.mxu0 0.0
        %1179 = vmatprep.subr.mxu0 0.0
        %1180 = vmatpush1.msra.mxu0 0.0
        %1181 = vmatprep.subr.mxu0 0.0
        %1182 = vmatpush1.msra.mxu0 0.0
        %1183 = vmatprep.subr.mxu0 0.0
        %1184 = vmatpush1.msra.mxu0 0.0
        %1185 = vmatprep.subr.mxu0 0.0
        %1186 = vmatpush1.msra.mxu0 0.0
        %1187 = vmatprep.subr.mxu0 0.0
        %1188 = vmatpush1.msra.mxu0 0.0
        %1189 = vmatprep.subr.mxu0 0.0
        %1190 = vmatpush1.msra.mxu0 0.0
        %1191 = vmatprep.subr.mxu0 0.0
        %1192 = vmatpush1.msra.mxu0 0.0
        %1193 = vmatprep.subr.mxu0 0.0
        %1194 = vmatpush1.msra.mxu0 0.0
        %1195 = vmatprep.subr.mxu0 0.0
        %1196 = vmatpush1.msra.mxu0 0.0
        %1197 = vmatprep.subr.mxu0 0.0
        %1198 = vmatpush1.msra.mxu0 0.0
        %1199 = vmatprep.subr.mxu0 0.0
        %1200 = vmatpush1.msra.mxu0 0.0
        %1201 = vmatprep.subr.mxu0 0.0
        %1202 = vmatpush1.msra.mxu0 0.0
        %1203 = vmatprep.subr.mxu0 0.0
        %1204 = vmatpush1.msra.mxu0 0.0
        %1205 = vmatprep.mubr.f32.mxu0 0.0
        %1206 = vmatmul.mubr.f32.gmra.mrb[0].mxu0 %v1003
        %v1207 = vpop.f32.mrb[0].mxu0
        %v1208 = vadd.f32 0.0, %v1207
        %v1209 = vpop.f32.mrb[0].mxu0
        %1210 = vmatprep.mubr.f32.mxu0 0.0
        %1211 = vmatmul.mubr.f32.gmra.mrb[0].mxu0 %v1006
        %v1212 = vpop.f32.mrb[0].mxu0
        %v1213 = vadd.f32 0.0, %v1212
        %v1214 = vpop.f32.mrb[0].mxu0
        %1215 = vmatprep.mubr.f32.mxu0 0.0
        %1216 = vmatmul.mubr.f32.gmra.mrb[0].mxu0 %v1009
        %v1217 = vpop.f32.mrb[0].mxu0
        %v1218 = vadd.f32 0.0, %v1217
        %v1219 = vpop.f32.mrb[0].mxu0
        %1220 = vmatprep.mubr.f32.mxu0 0.0
        %1221 = vmatmul.mubr.f32.gmra.mrb[0].mxu0 %v1012
        %v1222 = vpop.f32.mrb[0].mxu0
        %v1223 = vadd.f32 0.0, %v1222
        %v1224 = vpop.f32.mrb[0].mxu0
        %1225 = vmatprep.mubr.f32.mxu0 0.0
        %1226 = vmatmul.mubr.f32.gmra.mrb[0].mxu0 %v1015
        %v1227 = vpop.f32.mrb[0].mxu0
        %v1228 = vadd.f32 0.0, %v1227
        %v1229 = vpop.f32.mrb[0].mxu0
        %1230 = vmatprep.mubr.f32.mxu0 0.0
        %1231 = vmatmul.mubr.f32.gmra.mrb[0].mxu0 %v1018
        %v1232 = vpop.f32.mrb[0].mxu0
        %v1233 = vadd.f32 0.0, %v1232
        %v1234 = vpop.f32.mrb[0].mxu0
        %1235 = vmatprep.mubr.f32.mxu0 0.0
        %1236 = vmatmul.mubr.f32.gmra.mrb[0].mxu0 %v1021
        %v1237 = vpop.f32.mrb[0].mxu0
        %v1238 = vadd.f32 0.0, %v1237
        %v1239 = vpop.f32.mrb[0].mxu0
        %1240 = vmatprep.mubr.f32.mxu0 0.0
        %1241 = vmatmul.mubr.f32.gmra.mrb[0].mxu0 %v1024
        %v1242 = vpop.f32.mrb[0].mxu0
        %v1243 = vadd.f32 0.0, %v1242
        %v1244 = vpop.f32.mrb[0].mxu0
        %1245 = vdwg.mxu0
        %s1246 = scalar_lea.vmem %s247, 64 [#allocation3]
        %1247 = vst [vmem:[%s1246] sm:$0xff] %v1208
        %1248 = vst [vmem:[%s1246 + $0x8] sm:$0xff] %v1213
        %1249 = vst [vmem:[%s1246 + $0x10] sm:$0xff] %v1218
        %1250 = vst [vmem:[%s1246 + $0x18] sm:$0xff] %v1223
        %1251 = vst [vmem:[%s1246 + $0x20] sm:$0xff] %v1228
        %1252 = vst [vmem:[%s1246 + $0x28] sm:$0xff] %v1233
        %1253 = vst [vmem:[%s1246 + $0x30] sm:$0xff] %v1238
        %1254 = vst [vmem:[%s1246 + $0x38] sm:$0xff] %v1243
        %s1255 = scalar_lea.vmem [#allocation2], 2
        %v1256 = vld [vmem:[%s1255] ss:$5 sm:$0xff]
        %1257 = vmatprep.subr.mxu0 0.0
        %1258 = vmatpush1.msra.mxu0 %v1256
        %1259 = vmatprep.subr.mxu0 0.0
        %1260 = vmatpush1.msra.mxu0 0.0
        %1261 = vmatprep.subr.mxu0 0.0
        %1262 = vmatpush1.msra.mxu0 0.0
        %1263 = vmatprep.subr.mxu0 0.0
        %1264 = vmatpush1.msra.mxu0 0.0
        %1265 = vmatprep.subr.mxu0 0.0
        %1266 = vmatpush1.msra.mxu0 0.0
        %1267 = vmatprep.subr.mxu0 0.0
        %1268 = vmatpush1.msra.mxu0 0.0
        %1269 = vmatprep.subr.mxu0 0.0
        %1270 = vmatpush1.msra.mxu0 0.0
        %1271 = vmatprep.subr.mxu0 0.0
        %1272 = vmatpush1.msra.mxu0 0.0
        %1273 = vmatprep.subr.mxu0 0.0
        %1274 = vmatpush1.msra.mxu0 0.0
        %1275 = vmatprep.subr.mxu0 0.0
        %1276 = vmatpush1.msra.mxu0 0.0
        %1277 = vmatprep.subr.mxu0 0.0
        %1278 = vmatpush1.msra.mxu0 0.0
        %1279 = vmatprep.subr.mxu0 0.0
        %1280 = vmatpush1.msra.mxu0 0.0
        %1281 = vmatprep.subr.mxu0 0.0
        %1282 = vmatpush1.msra.mxu0 0.0
        %1283 = vmatprep.subr.mxu0 0.0
        %1284 = vmatpush1.msra.mxu0 0.0
        %1285 = vmatprep.subr.mxu0 0.0
        %1286 = vmatpush1.msra.mxu0 0.0
        %1287 = vmatprep.subr.mxu0 0.0
        %1288 = vmatpush1.msra.mxu0 0.0
        %1289 = vmatprep.subr.mxu0 0.0
        %1290 = vmatpush1.msra.mxu0 0.0
        %1291 = vmatprep.subr.mxu0 0.0
        %1292 = vmatpush1.msra.mxu0 0.0
        %1293 = vmatprep.subr.mxu0 0.0
        %1294 = vmatpush1.msra.mxu0 0.0
        %1295 = vmatprep.subr.mxu0 0.0
        %1296 = vmatpush1.msra.mxu0 0.0
        %1297 = vmatprep.subr.mxu0 0.0
        %1298 = vmatpush1.msra.mxu0 0.0
        %1299 = vmatprep.subr.mxu0 0.0
        %1300 = vmatpush1.msra.mxu0 0.0
        %1301 = vmatprep.subr.mxu0 0.0
        %1302 = vmatpush1.msra.mxu0 0.0
        %1303 = vmatprep.subr.mxu0 0.0
        %1304 = vmatpush1.msra.mxu0 0.0
        %1305 = vmatprep.subr.mxu0 0.0
        %1306 = vmatpush1.msra.mxu0 0.0
        %1307 = vmatprep.subr.mxu0 0.0
        %1308 = vmatpush1.msra.mxu0 0.0
        %1309 = vmatprep.subr.mxu0 0.0
        %1310 = vmatpush1.msra.mxu0 0.0
        %1311 = vmatprep.subr.mxu0 0.0
        %1312 = vmatpush1.msra.mxu0 0.0
        %1313 = vmatprep.subr.mxu0 0.0
        %1314 = vmatpush1.msra.mxu0 0.0
        %1315 = vmatprep.subr.mxu0 0.0
        %1316 = vmatpush1.msra.mxu0 0.0
        %1317 = vmatprep.subr.mxu0 0.0
        %1318 = vmatpush1.msra.mxu0 0.0
        %1319 = vmatprep.subr.mxu0 0.0
        %1320 = vmatpush1.msra.mxu0 0.0
        %1321 = vmatprep.mubr.f32.mxu0 0.0
        %1322 = vmatmul.mubr.f32.gmra.mrb[0].mxu0 %v1003
        %v1323 = vpop.f32.mrb[0].mxu0
        %v1324 = vadd.f32 0.0, %v1323
        %v1325 = vpop.f32.mrb[0].mxu0
        %1326 = vmatprep.mubr.f32.mxu0 0.0
        %1327 = vmatmul.mubr.f32.gmra.mrb[0].mxu0 %v1006
        %v1328 = vpop.f32.mrb[0].mxu0
        %v1329 = vadd.f32 0.0, %v1328
        %v1330 = vpop.f32.mrb[0].mxu0
        %1331 = vmatprep.mubr.f32.mxu0 0.0
        %1332 = vmatmul.mubr.f32.gmra.mrb[0].mxu0 %v1009
        %v1333 = vpop.f32.mrb[0].mxu0
        %v1334 = vadd.f32 0.0, %v1333
        %v1335 = vpop.f32.mrb[0].mxu0
        %1336 = vmatprep.mubr.f32.mxu0 0.0
        %1337 = vmatmul.mubr.f32.gmra.mrb[0].mxu0 %v1012
        %v1338 = vpop.f32.mrb[0].mxu0
        %v1339 = vadd.f32 0.0, %v1338
        %v1340 = vpop.f32.mrb[0].mxu0
        %1341 = vmatprep.mubr.f32.mxu0 0.0
        %1342 = vmatmul.mubr.f32.gmra.mrb[0].mxu0 %v1015
        %v1343 = vpop.f32.mrb[0].mxu0
        %v1344 = vadd.f32 0.0, %v1343
        %v1345 = vpop.f32.mrb[0].mxu0
        %1346 = vmatprep.mubr.f32.mxu0 0.0
        %1347 = vmatmul.mubr.f32.gmra.mrb[0].mxu0 %v1018
        %v1348 = vpop.f32.mrb[0].mxu0
        %v1349 = vadd.f32 0.0, %v1348
        %v1350 = vpop.f32.mrb[0].mxu0
        %1351 = vmatprep.mubr.f32.mxu0 0.0
        %1352 = vmatmul.mubr.f32.gmra.mrb[0].mxu0 %v1021
        %v1353 = vpop.f32.mrb[0].mxu0
        %v1354 = vadd.f32 0.0, %v1353
        %v1355 = vpop.f32.mrb[0].mxu0
        %1356 = vmatprep.mubr.f32.mxu0 0.0
        %1357 = vmatmul.mubr.f32.gmra.mrb[0].mxu0 %v1024
        %v1358 = vpop.f32.mrb[0].mxu0
        %v1359 = vadd.f32 0.0, %v1358
        %v1360 = vpop.f32.mrb[0].mxu0
        %1361 = vdwg.mxu0
        %s1362 = scalar_lea.vmem %s247, 128 [#allocation3]
        %1363 = vst [vmem:[%s1362] sm:$0xff] %v1324
        %1364 = vst [vmem:[%s1362 + $0x8] sm:$0xff] %v1329
        %1365 = vst [vmem:[%s1362 + $0x10] sm:$0xff] %v1334
        %1366 = vst [vmem:[%s1362 + $0x18] sm:$0xff] %v1339
        %1367 = vst [vmem:[%s1362 + $0x20] sm:$0xff] %v1344
        %1368 = vst [vmem:[%s1362 + $0x28] sm:$0xff] %v1349
        %1369 = vst [vmem:[%s1362 + $0x30] sm:$0xff] %v1354
        %1370 = vst [vmem:[%s1362 + $0x38] sm:$0xff] %v1359
        %s1371 = scalar_lea.vmem [#allocation2], 3
        %v1372 = vld [vmem:[%s1371] ss:$5 sm:$0xff]
        %1373 = vmatprep.subr.mxu0 0.0
        %1374 = vmatpush1.msra.mxu0 %v1372
        %1375 = vmatprep.subr.mxu0 0.0
        %1376 = vmatpush1.msra.mxu0 0.0
        %1377 = vmatprep.subr.mxu0 0.0
        %1378 = vmatpush1.msra.mxu0 0.0
        %1379 = vmatprep.subr.mxu0 0.0
        %1380 = vmatpush1.msra.mxu0 0.0
        %1381 = vmatprep.subr.mxu0 0.0
        %1382 = vmatpush1.msra.mxu0 0.0
        %1383 = vmatprep.subr.mxu0 0.0
        %1384 = vmatpush1.msra.mxu0 0.0
        %1385 = vmatprep.subr.mxu0 0.0
        %1386 = vmatpush1.msra.mxu0 0.0
        %1387 = vmatprep.subr.mxu0 0.0
        %1388 = vmatpush1.msra.mxu0 0.0
        %1389 = vmatprep.subr.mxu0 0.0
        %1390 = vmatpush1.msra.mxu0 0.0
        %1391 = vmatprep.subr.mxu0 0.0
        %1392 = vmatpush1.msra.mxu0 0.0
        %1393 = vmatprep.subr.mxu0 0.0
        %1394 = vmatpush1.msra.mxu0 0.0
        %1395 = vmatprep.subr.mxu0 0.0
        %1396 = vmatpush1.msra.mxu0 0.0
        %1397 = vmatprep.subr.mxu0 0.0
        %1398 = vmatpush1.msra.mxu0 0.0
        %1399 = vmatprep.subr.mxu0 0.0
        %1400 = vmatpush1.msra.mxu0 0.0
        %1401 = vmatprep.subr.mxu0 0.0
        %1402 = vmatpush1.msra.mxu0 0.0
        %1403 = vmatprep.subr.mxu0 0.0
        %1404 = vmatpush1.msra.mxu0 0.0
        %1405 = vmatprep.subr.mxu0 0.0
        %1406 = vmatpush1.msra.mxu0 0.0
        %1407 = vmatprep.subr.mxu0 0.0
        %1408 = vmatpush1.msra.mxu0 0.0
        %1409 = vmatprep.subr.mxu0 0.0
        %1410 = vmatpush1.msra.mxu0 0.0
        %1411 = vmatprep.subr.mxu0 0.0
        %1412 = vmatpush1.msra.mxu0 0.0
        %1413 = vmatprep.subr.mxu0 0.0
        %1414 = vmatpush1.msra.mxu0 0.0
        %1415 = vmatprep.subr.mxu0 0.0
        %1416 = vmatpush1.msra.mxu0 0.0
        %1417 = vmatprep.subr.mxu0 0.0
        %1418 = vmatpush1.msra.mxu0 0.0
        %1419 = vmatprep.subr.mxu0 0.0
        %1420 = vmatpush1.msra.mxu0 0.0
        %1421 = vmatprep.subr.mxu0 0.0
        %1422 = vmatpush1.msra.mxu0 0.0
        %1423 = vmatprep.subr.mxu0 0.0
        %1424 = vmatpush1.msra.mxu0 0.0
        %1425 = vmatprep.subr.mxu0 0.0
        %1426 = vmatpush1.msra.mxu0 0.0
        %1427 = vmatprep.subr.mxu0 0.0
        %1428 = vmatpush1.msra.mxu0 0.0
        %1429 = vmatprep.subr.mxu0 0.0
        %1430 = vmatpush1.msra.mxu0 0.0
        %1431 = vmatprep.subr.mxu0 0.0
        %1432 = vmatpush1.msra.mxu0 0.0
        %1433 = vmatprep.subr.mxu0 0.0
        %1434 = vmatpush1.msra.mxu0 0.0
        %1435 = vmatprep.subr.mxu0 0.0
        %1436 = vmatpush1.msra.mxu0 0.0
        %1437 = vmatprep.mubr.f32.mxu0 0.0
        %1438 = vmatmul.mubr.f32.gmra.mrb[0].mxu0 %v1003
        %v1439 = vpop.f32.mrb[0].mxu0
        %v1440 = vadd.f32 0.0, %v1439
        %v1441 = vpop.f32.mrb[0].mxu0
        %1442 = vmatprep.mubr.f32.mxu0 0.0
        %1443 = vmatmul.mubr.f32.gmra.mrb[0].mxu0 %v1006
        %v1444 = vpop.f32.mrb[0].mxu0
        %v1445 = vadd.f32 0.0, %v1444
        %v1446 = vpop.f32.mrb[0].mxu0
        %1447 = vmatprep.mubr.f32.mxu0 0.0
        %1448 = vmatmul.mubr.f32.gmra.mrb[0].mxu0 %v1009
        %v1449 = vpop.f32.mrb[0].mxu0
        %v1450 = vadd.f32 0.0, %v1449
        %v1451 = vpop.f32.mrb[0].mxu0
        %1452 = vmatprep.mubr.f32.mxu0 0.0
        %1453 = vmatmul.mubr.f32.gmra.mrb[0].mxu0 %v1012
        %v1454 = vpop.f32.mrb[0].mxu0
        %v1455 = vadd.f32 0.0, %v1454
        %v1456 = vpop.f32.mrb[0].mxu0
        %1457 = vmatprep.mubr.f32.mxu0 0.0
        %1458 = vmatmul.mubr.f32.gmra.mrb[0].mxu0 %v1015
        %v1459 = vpop.f32.mrb[0].mxu0
        %v1460 = vadd.f32 0.0, %v1459
        %v1461 = vpop.f32.mrb[0].mxu0
        %1462 = vmatprep.mubr.f32.mxu0 0.0
        %1463 = vmatmul.mubr.f32.gmra.mrb[0].mxu0 %v1018
        %v1464 = vpop.f32.mrb[0].mxu0
        %v1465 = vadd.f32 0.0, %v1464
        %v1466 = vpop.f32.mrb[0].mxu0
        %1467 = vmatprep.mubr.f32.mxu0 0.0
        %1468 = vmatmul.mubr.f32.gmra.mrb[0].mxu0 %v1021
        %v1469 = vpop.f32.mrb[0].mxu0
        %v1470 = vadd.f32 0.0, %v1469
        %v1471 = vpop.f32.mrb[0].mxu0
        %1472 = vmatprep.mubr.f32.mxu0 0.0
        %1473 = vmatmul.mubr.f32.gmra.mrb[0].mxu0 %v1024
        %v1474 = vpop.f32.mrb[0].mxu0
        %v1475 = vadd.f32 0.0, %v1474
        %v1476 = vpop.f32.mrb[0].mxu0
        %1477 = vdwg.mxu0
        %s1478 = scalar_lea.vmem %s247, 192 [#allocation3]
        %1479 = vst [vmem:[%s1478] sm:$0xff] %v1440
        %1480 = vst [vmem:[%s1478 + $0x8] sm:$0xff] %v1445
        %1481 = vst [vmem:[%s1478 + $0x10] sm:$0xff] %v1450
        %1482 = vst [vmem:[%s1478 + $0x18] sm:$0xff] %v1455
        %1483 = vst [vmem:[%s1478 + $0x20] sm:$0xff] %v1460
        %1484 = vst [vmem:[%s1478 + $0x28] sm:$0xff] %v1465
        %1485 = vst [vmem:[%s1478 + $0x30] sm:$0xff] %v1470
        %1486 = vst [vmem:[%s1478 + $0x38] sm:$0xff] %v1475
        %s1487 = scalar_lea.vmem [#allocation2], 4
        %v1488 = vld [vmem:[%s1487] ss:$5 sm:$0xff]
        %1489 = vmatprep.subr.mxu0 0.0
        %1490 = vmatpush1.msra.mxu0 %v1488
        %1491 = vmatprep.subr.mxu0 0.0
        %1492 = vmatpush1.msra.mxu0 0.0
        %1493 = vmatprep.subr.mxu0 0.0
        %1494 = vmatpush1.msra.mxu0 0.0
        %1495 = vmatprep.subr.mxu0 0.0
        %1496 = vmatpush1.msra.mxu0 0.0
        %1497 = vmatprep.subr.mxu0 0.0
        %1498 = vmatpush1.msra.mxu0 0.0
        %1499 = vmatprep.subr.mxu0 0.0
        %1500 = vmatpush1.msra.mxu0 0.0
        %1501 = vmatprep.subr.mxu0 0.0
        %1502 = vmatpush1.msra.mxu0 0.0
        %1503 = vmatprep.subr.mxu0 0.0
        %1504 = vmatpush1.msra.mxu0 0.0
        %1505 = vmatprep.subr.mxu0 0.0
        %1506 = vmatpush1.msra.mxu0 0.0
        %1507 = vmatprep.subr.mxu0 0.0
        %1508 = vmatpush1.msra.mxu0 0.0
        %1509 = vmatprep.subr.mxu0 0.0
        %1510 = vmatpush1.msra.mxu0 0.0
        %1511 = vmatprep.subr.mxu0 0.0
        %1512 = vmatpush1.msra.mxu0 0.0
        %1513 = vmatprep.subr.mxu0 0.0
        %1514 = vmatpush1.msra.mxu0 0.0
        %1515 = vmatprep.subr.mxu0 0.0
        %1516 = vmatpush1.msra.mxu0 0.0
        %1517 = vmatprep.subr.mxu0 0.0
        %1518 = vmatpush1.msra.mxu0 0.0
        %1519 = vmatprep.subr.mxu0 0.0
        %1520 = vmatpush1.msra.mxu0 0.0
        %1521 = vmatprep.subr.mxu0 0.0
        %1522 = vmatpush1.msra.mxu0 0.0
        %1523 = vmatprep.subr.mxu0 0.0
        %1524 = vmatpush1.msra.mxu0 0.0
        %1525 = vmatprep.subr.mxu0 0.0
        %1526 = vmatpush1.msra.mxu0 0.0
        %1527 = vmatprep.subr.mxu0 0.0
        %1528 = vmatpush1.msra.mxu0 0.0
        %1529 = vmatprep.subr.mxu0 0.0
        %1530 = vmatpush1.msra.mxu0 0.0
        %1531 = vmatprep.subr.mxu0 0.0
        %1532 = vmatpush1.msra.mxu0 0.0
        %1533 = vmatprep.subr.mxu0 0.0
        %1534 = vmatpush1.msra.mxu0 0.0
        %1535 = vmatprep.subr.mxu0 0.0
        %1536 = vmatpush1.msra.mxu0 0.0
        %1537 = vmatprep.subr.mxu0 0.0
        %1538 = vmatpush1.msra.mxu0 0.0
        %1539 = vmatprep.subr.mxu0 0.0
        %1540 = vmatpush1.msra.mxu0 0.0
        %1541 = vmatprep.subr.mxu0 0.0
        %1542 = vmatpush1.msra.mxu0 0.0
        %1543 = vmatprep.subr.mxu0 0.0
        %1544 = vmatpush1.msra.mxu0 0.0
        %1545 = vmatprep.subr.mxu0 0.0
        %1546 = vmatpush1.msra.mxu0 0.0
        %1547 = vmatprep.subr.mxu0 0.0
        %1548 = vmatpush1.msra.mxu0 0.0
        %1549 = vmatprep.subr.mxu0 0.0
        %1550 = vmatpush1.msra.mxu0 0.0
        %1551 = vmatprep.subr.mxu0 0.0
        %1552 = vmatpush1.msra.mxu0 0.0
        %1553 = vmatprep.mubr.f32.mxu0 0.0
        %1554 = vmatmul.mubr.f32.gmra.mrb[0].mxu0 %v1003
        %v1555 = vpop.f32.mrb[0].mxu0
        %v1556 = vadd.f32 0.0, %v1555
        %v1557 = vpop.f32.mrb[0].mxu0
        %1558 = vmatprep.mubr.f32.mxu0 0.0
        %1559 = vmatmul.mubr.f32.gmra.mrb[0].mxu0 %v1006
        %v1560 = vpop.f32.mrb[0].mxu0
        %v1561 = vadd.f32 0.0, %v1560
        %v1562 = vpop.f32.mrb[0].mxu0
        %1563 = vmatprep.mubr.f32.mxu0 0.0
        %1564 = vmatmul.mubr.f32.gmra.mrb[0].mxu0 %v1009
        %v1565 = vpop.f32.mrb[0].mxu0
        %v1566 = vadd.f32 0.0, %v1565
        %v1567 = vpop.f32.mrb[0].mxu0
        %1568 = vmatprep.mubr.f32.mxu0 0.0
        %1569 = vmatmul.mubr.f32.gmra.mrb[0].mxu0 %v1012
        %v1570 = vpop.f32.mrb[0].mxu0
        %v1571 = vadd.f32 0.0, %v1570
        %v1572 = vpop.f32.mrb[0].mxu0
        %1573 = vmatprep.mubr.f32.mxu0 0.0
        %1574 = vmatmul.mubr.f32.gmra.mrb[0].mxu0 %v1015
        %v1575 = vpop.f32.mrb[0].mxu0
        %v1576 = vadd.f32 0.0, %v1575
        %v1577 = vpop.f32.mrb[0].mxu0
        %1578 = vmatprep.mubr.f32.mxu0 0.0
        %1579 = vmatmul.mubr.f32.gmra.mrb[0].mxu0 %v1018
        %v1580 = vpop.f32.mrb[0].mxu0
        %v1581 = vadd.f32 0.0, %v1580
        %v1582 = vpop.f32.mrb[0].mxu0
        %1583 = vmatprep.mubr.f32.mxu0 0.0
        %1584 = vmatmul.mubr.f32.gmra.mrb[0].mxu0 %v1021
        %v1585 = vpop.f32.mrb[0].mxu0
        %v1586 = vadd.f32 0.0, %v1585
        %v1587 = vpop.f32.mrb[0].mxu0
        %1588 = vmatprep.mubr.f32.mxu0 0.0
        %1589 = vmatmul.mubr.f32.gmra.mrb[0].mxu0 %v1024
        %v1590 = vpop.f32.mrb[0].mxu0
        %v1591 = vadd.f32 0.0, %v1590
        %v1592 = vpop.f32.mrb[0].mxu0
        %1593 = vdwg.mxu0
        %s1594 = scalar_lea.vmem %s247, 256 [#allocation3]
        %1595 = vst [vmem:[%s1594] sm:$0xff] %v1556
        %1596 = vst [vmem:[%s1594 + $0x8] sm:$0xff] %v1561
        %1597 = vst [vmem:[%s1594 + $0x10] sm:$0xff] %v1566
        %1598 = vst [vmem:[%s1594 + $0x18] sm:$0xff] %v1571
        %1599 = vst [vmem:[%s1594 + $0x20] sm:$0xff] %v1576
        %1600 = vst [vmem:[%s1594 + $0x28] sm:$0xff] %v1581
        %1601 = vst [vmem:[%s1594 + $0x30] sm:$0xff] %v1586
        %1602 = vst [vmem:[%s1594 + $0x38] sm:$0xff] %v1591
        %s1603 = sand.u32 %s156, 1
        %s1604 = scalar_lea.sflag [#allocation4], %s1603
        %s1605 = sand.u32 %s156, 1
        %s1606 = smul.addr %s1605, 320
        %s1607 = scalar_lea.vmem [#allocation3], %s1606
        // Predicated region
        $region45: #{plain_decoder_forward.1} parent=39 // pred_check
          %p1608 = pneg %p166
        $region46: #{plain_decoder_forward.1} parent=39 // pred_check_branch
          %1610 = sbr.rel (%p1608) target = $region48
        $region47: #{plain_decoder_forward.1} parent=39 // pred_region
          %s1611 = smul.u32 8, %s24
          %s1613 = ssub.s32 5120, 5120
          %1614 = vsyncadd %s1604, %s1613
          %s1615 = smul.addr %s23, 40
          %s1616 = sadd.s32 %s1611, %s1615
          %s1617 = smul.addr %s1616, 128
          %s1618 = scalar_lea.hbm %s5, %s1617
          %s1619 = sshll.u32 %s1607, 4
          %s1620 = int_to_ptr.vmem [resolvable:$true] %s1619
          %1625 = dma.vmem_to_hbm [thread:$0]  %s1620, 5120, %s1618, %s1604, 128, 128, 8
        $region48: #{plain_decoder_forward.1} parent=39 // pred_fallthru
          _
      $region40: #{plain_decoder_forward.1} parent=5 // pred_fallthru
        _
      %p1626 = scmp.le.s32.totalorder 2, %s14
      // Predicated region
      $region49: #{plain_decoder_forward.1} parent=5 // pred_check
        %p1627 = pneg %p1626
      $region50: #{plain_decoder_forward.1} parent=5 // pred_check_branch
        %1629 = sbr.rel (%p1627) target = $region52
      $region51: #{plain_decoder_forward.1} parent=5 // pred_region
        %s1630 = ssub.s32 %s14, 2
        // Predicated region
        $region53: #{plain_decoder_forward.1} parent=51 // pred_check
          %p1631 = pneg %p172
        $region54: #{plain_decoder_forward.1} parent=51 // pred_check_branch
          %1633 = sbr.rel (%p1631) target = $region56
        $region55: #{plain_decoder_forward.1} parent=51 // pred_region
          %s1634 = sand.u32 %s157, 1
          %s1635 = scalar_lea.sflag [#allocation4], %s1634
          %s1636 = sand.u32 %s157, 1
          %s1637 = smul.addr %s1636, 320
          %s1638 = scalar_lea.vmem [#allocation3], %s1637
          %1639 = dma.done %s1635, 5120
        $region56: #{plain_decoder_forward.1} parent=51 // pred_fallthru
          _
      $region52: #{plain_decoder_forward.1} parent=5 // pred_fallthru
        _
    $region6: #{plain_decoder_forward.1} parent=1 // loop_footer
      %s18 = sadd.s32 1, %s14
    $region7: #{plain_decoder_forward.1} parent=1 // loop_footer_branch
      %13 = sbr.rel target = $region3
    $region8: #{plain_decoder_forward.1} parent=1 // loop_exit
      _
    %1640 = vsyncpa [#allocation4], 1
    %s1641 = scalar_lea.sflag [#allocation4], 1
    %1642 = vsyncpa %s1641, 1

</llo_original>
